<compile_context>
chip_gen: v6e
topology: v6e:2x2x1
jax: 0.10.0
libtpu: 0.0.40
codegen_flags: <defaults>
</compile_context>

<pallas_src>
from functools import partial
from typing import NamedTuple, Tuple

import numpy as np
import jax
import jax.numpy as jnp
from jax.experimental import pallas as pl
from jax.experimental.pallas import tpu as pltpu


def _log2(v):
    l = int(round(np.log2(v)))
    assert (1 << l) == v, f"{v} must be a power of two"
    return l


def _mm_small(a, b):
    """(M, K) @ (K, N).  K <= 8 -> VPU outer-product accumulate (operands are
    already resident in vregs; avoids a padded MXU push + serial MRF drain);
    larger K -> MXU."""
    K = a.shape[1]
    if K <= 8:
        out = None
        for kk in range(K):
            t = a[:, kk:kk + 1] * b[kk:kk + 1, :]
            out = t if out is None else out + t
        return out
    return jnp.dot(a, b, preferred_element_type=jnp.float32)


class Meta(NamedTuple):
    channels2: int
    couts: Tuple[int, ...]
    cins: Tuple[int, ...]
    row_offs: Tuple[int, ...]
    fc_row_off: int
    k: int
    fc_in: int


# ------------------------------ fused kernel -------------------------------

def _make_kernel(*, B, depth, channels2, dims, couts, cins, row_offs,
                 fc_row_off, featdim_last, l_last, k, fc_in):
    C = channels2
    L0 = dims[0]
    Bd0 = B * L0

    def kernel(x_ref, w_ref, cut_ref, o_ref):
        f32, i32 = jnp.float32, jnp.int32

        # ---- (B, C, L0) -> (C, B*L0) with columns m = b*L0 + l: one-hot lane
        #      placement matmuls (keeps the relayout inside the kernel). ----
        pcol = jax.lax.broadcasted_iota(i32, (L0, Bd0), 1)
        prow = jax.lax.broadcasted_iota(i32, (L0, Bd0), 0)
        x2d = None
        for b in range(B):
            Pb = (pcol == prow + b * L0).astype(f32)            # (L0, B*L0)
            t = _mm_small(x_ref[b], Pb)                         # (C, B*L0)
            x2d = t if x2d is None else x2d + t
        blocks = [x2d]                                          # row counts sum to cins[0]

        for i in range(depth):
            dim, cout, cin = dims[i], couts[i], cins[i]
            half = dim // 2
            Bd, Bh = B * dim, B * half
            lg_dim, lg_half = _log2(dim), _log2(half)
            featdim = cout // C
            ro = row_offs[i]

            wblk = w_ref[ro:ro + cout, 0:cin]                   # (cout, cin)
            gamma = w_ref[ro:ro + cout, cin:cin + 1]            # (cout, 1)
            beta = w_ref[ro:ro + cout, cin + 1:cin + 2]         # (cout, 1)

            # ---- Conv1d(kernel_size=1): K = cin is tiny -> VPU MAC over the
            #      row blocks.  (Conv bias dropped: exactly cancelled by the
            #      train-mode BatchNorm mean subtraction.) ----
            y = None
            kk = 0
            for blk in blocks:
                t = _mm_small(wblk[:, kk:kk + blk.shape[0]], blk)
                kk += blk.shape[0]
                y = t if y is None else y + t                   # (cout, Bd)

            # ---- BatchNorm1d (training-mode batch stats), one fused reduction
            #      over stacked [y; y*y].  Single-pass E[x^2]-E[x]^2 clamped at
            #      0 (see review note on cancellation). ----
            s = jnp.sum(jnp.stack([y, y * y], axis=0), axis=2, keepdims=True) \
                * (1.0 / float(Bd))                             # (2, cout, 1)
            mean, ex2 = s[0], s[1]
            var = jnp.maximum(ex2 - mean * mean, 0.0)
            z = (y - mean) * jax.lax.rsqrt(var + 1e-5)
            z = z * gamma + beta
            # ---- LeakyReLU(0.01) ----
            z = jnp.where(z > 0, z, 0.01 * z)

            # ---- kd index_select composed with the even/odd pairing.
            #      Output column m2 = b*half + l2 of parity t reads
            #        z[f*C + p//dim, b*dim + p%dim],  p = C*(2*l2+t) + cut[b, 2*l2+t]
            #      (channel c = f*C + c2 with c2 minor -- matches the PyTorch
            #      view order used by KDNet_Batch2's index_select). ----
            src_iota = jax.lax.broadcasted_iota(i32, (Bd, Bh), 0)
            m2 = jax.lax.broadcasted_iota(i32, (1, Bh), 1)
            b2 = jnp.right_shift(m2, lg_half)
            l2 = jnp.bitwise_and(m2, half - 1)
            c2_iota = jax.lax.broadcasted_iota(i32, (C, Bh), 0)
            f_iota = jax.lax.broadcasted_iota(i32, (featdim, 1), 0)
            new_blocks = []
            for parity in range(2):
                cut_t = cut_ref[2 * i + parity:2 * i + parity + 1, 0:Bh]    # (1, Bh)
                p = 2 * C * l2 + parity * C + cut_t
                lsel = jnp.bitwise_and(p, dim - 1)
                c2sel = jnp.right_shift(p, lg_dim)
                src = b2 * dim + lsel                                       # (1, Bh)
                onehot = (src_iota == src).astype(f32)                      # (Bd, Bh)
                g = _mm_small(z, onehot)                                    # (cout, Bh)
                cmask = (c2_iota == c2sel).astype(f32)                      # (C, Bh)
                if featdim == 1:
                    nb = jnp.sum(g * cmask, axis=0, keepdims=True)          # (1, Bh)
                else:
                    nb = None
                    for f in range(featdim):
                        gs = jnp.sum(g[f * C:(f + 1) * C, :] * cmask,
                                     axis=0, keepdims=True)                 # (1, Bh)
                        t = (f_iota == f).astype(f32) * gs                  # (featdim, Bh)
                        nb = t if nb is None else nb + t
                new_blocks.append(nb)
            blocks = new_blocks              # [even (featdim, Bh), odd (featdim, Bh)]

        # ---- final Linear, emitted lane-dense as (B, k) (lane width = k).
        #      fc weights are packed transposed, so every term is a (1,1)x(1,k)
        #      broadcast MAC on the VPU; no selector matmul, no transpose, no
        #      post-kernel wrapper op. ----
        fro = fc_row_off
        fcT = w_ref[fro:fro + fc_in, 0:k]                       # (fc_in, k) == fc_w.T
        bias = w_ref[fro + fc_in:fro + fc_in + 1, 0:k]          # (1, k)
        b_iota = jax.lax.broadcasted_iota(i32, (B, 1), 0)
        out = jnp.zeros((B, k), f32) + bias
        for b in range(B):
            row = None
            for half_idx, blk in enumerate(blocks):
                for r in range(featdim_last):
                    c = half_idx * featdim_last + r             # PyTorch flatten: q = c*l_last + l
                    for l in range(l_last):
                        q = c * l_last + l
                        a = blk[r:r + 1, b * l_last + l:b * l_last + l + 1]   # (1, 1)
                        t = a * fcT[q:q + 1, :]
                        row = t if row is None else row + t
            out = out + (b_iota == b).astype(f32) * row
        o_ref[...] = out                                        # single (B, k) store

    return kernel


# ------------------------------- parameters --------------------------------

def init_params(key, depth, k, input_levels, channels, features=None):
    """PyTorch-equivalent parameters for KDNet_Batch2 (channels2 == channels)."""
    channels2 = channels
    if features is None:
        features = 2 ** (input_levels - depth)
    current = channels2 // 2
    ch_list = (2 ** (np.arange(1, input_levels + 1) // 2) * features).tolist()
    gain = float(np.sqrt(2.0 / (1.0 + 0.01 ** 2)))   # nn.init.calculate_gain('leaky_relu')
    convs = []
    for i in range(depth):
        out_c = int(ch_list[i])
        cin = current * 2
        cout = out_c * channels2
        key, kw = jax.random.split(key)
        bound = gain * np.sqrt(6.0 / (cin + cout))   # xavier_uniform_, kernel size 1
        w = jax.random.uniform(kw, (cout, cin), jnp.float32, -bound, bound)
        # Conv1d bias omitted: a per-channel constant before train-mode BN is
        # exactly cancelled by the batch-mean subtraction.
        convs.append(dict(w=w,
                          gamma=jnp.ones((cout,), jnp.float32),
                          beta=jnp.zeros((cout,), jnp.float32)))
        current = out_c
    fc_in = current * 2 ** (input_levels - depth + 1)
    fc_w = jnp.full((k, fc_in), 0.001, jnp.float32)  # nn.init.constant_(weight, 0.001)
    fc_b = jnp.zeros((k,), jnp.float32)              # nn.init.constant_(bias, 0)
    return dict(convs=convs, fc_w=fc_w, fc_b=fc_b)


def pack_params(params):
    """One-time re-layout: every learned tensor goes into ONE padded f32 array
    (per-layer block: [conv W | gamma | beta]; final block: [fc_w.T ; fc_b])."""
    convs = params["convs"]
    channels2 = int(convs[0]["w"].shape[1])
    couts = tuple(int(p["w"].shape[0]) for p in convs)
    cins = tuple(int(p["w"].shape[1]) for p in convs)
    k, fc_in = (int(d) for d in params["fc_w"].shape)
    width = max(max(c + 2 for c in cins), k)
    rows, row_offs, r = [], [], 0
    for p in convs:
        cout, cin = (int(d) for d in p["w"].shape)
        blk = jnp.zeros((cout, width), jnp.float32)
        blk = blk.at[:, :cin].set(p["w"])
        blk = blk.at[:, cin].set(p["gamma"])
        blk = blk.at[:, cin + 1].set(p["beta"])
        rows.append(blk)
        row_offs.append(r)
        r += cout
    fc_row_off = r
    fc_blk = jnp.zeros((fc_in + 1, width), jnp.float32)
    fc_blk = fc_blk.at[:fc_in, :k].set(params["fc_w"].T)   # stored transposed
    fc_blk = fc_blk.at[fc_in, :k].set(params["fc_b"])
    rows.append(fc_blk)
    wpack = jnp.concatenate(rows, axis=0)
    meta = Meta(channels2=channels2, couts=couts, cins=cins,
                row_offs=tuple(row_offs), fc_row_off=fc_row_off,
                k=k, fc_in=fc_in)
    return wpack, meta


# --------------------------------- forward ----------------------------------

@partial(jax.jit, static_argnames=("meta",))
def kdnet_forward(wpack, x, cutdims, meta):
    """x: (B, channels, 2**input_levels); cutdims[-i-1] is used at level i
    (PyTorch ordering).  Returns (B, k)."""
    B, _, L0 = x.shape
    depth = len(meta.couts)
    input_levels = _log2(L0)
    dims = tuple(2 ** (input_levels - i) for i in range(depth))
    featdim_last = meta.couts[-1] // meta.channels2
    l_last = meta.fc_in // (2 * featdim_last)

    # Pack every level's cut indices (pre-split by output-position parity) into
    # one int32 array -> a single startup DMA for all data-dependent indices.
    maxBh = B * dims[0] // 2
    crows = []
    for i in range(depth):
        cut = cutdims[-i - 1].astype(jnp.int32)          # (B, dims[i])
        half = dims[i] // 2
        ev = cut[:, 0::2].reshape(1, B * half)
        od = cut[:, 1::2].reshape(1, B * half)
        pad = ((0, 0), (0, maxBh - B * half))
        crows += [jnp.pad(ev, pad), jnp.pad(od, pad)]
    cutpack = jnp.concatenate(crows, axis=0)             # (2*depth, maxBh)

    kernel = _make_kernel(B=B, depth=depth, channels2=meta.channels2,
                          dims=dims, couts=meta.couts, cins=meta.cins,
                          row_offs=meta.row_offs, fc_row_off=meta.fc_row_off,
                          featdim_last=featdim_last, l_last=l_last,
                          k=meta.k, fc_in=meta.fc_in)
    return pl.pallas_call(
        kernel,
        out_shape=jax.ShapeDtypeStruct((B, meta.k), jnp.float32),
        in_specs=[pl.BlockSpec(memory_space=pltpu.MemorySpace.VMEM)] * 3,
        out_specs=pl.BlockSpec(memory_space=pltpu.MemorySpace.VMEM),
    )(x.astype(jnp.float32), wpack, cutpack)


# ----------------------------------- main ------------------------------------

if __name__ == "__main__":
    depth, k, input_levels, channels, batch = 4, 16, 4, 4, 2

    key = jax.random.PRNGKey(0)
    kp, kx, kc = jax.random.split(key, 3)
    params = init_params(kp, depth, k, input_levels, channels)
    wpack, meta = pack_params(params)

    # kd-tree leaf features: (batch, channels, 2**input_levels)
    x = jax.random.normal(kx, (batch, channels, 2 ** input_levels), jnp.float32)

    # cutdims[-i-1] is consumed at level i with dim = 2**(input_levels - i);
    # values are split dimensions in [0, channels).
    cutdims = []
    for lvl in range(depth):
        dim = 2 ** (input_levels - depth + 1 + lvl)
        kc, sub = jax.random.split(kc)
        cutdims.append(jax.random.randint(sub, (batch, dim), 0, channels, jnp.int32))

    out = kdnet_forward(wpack, x, tuple(cutdims), meta)
    out = jax.block_until_ready(out)
    assert out.shape == (batch, k), out.shape
    print("KERNEL_OK")
</pallas_src>

<mosaic_0001>
module attributes {stable_mosaic.version = 11 : i64} {
  func.func @kernel(%arg0: memref<2x4x16xf32, #tpu.memory_space<vmem>>, %arg1: memref<45x16xf32, #tpu.memory_space<vmem>>, %arg2: memref<8x16xi32, #tpu.memory_space<vmem>>, %arg3: memref<2x16xf32, #tpu.memory_space<vmem>>) attributes {dimension_semantics = [], scalar_prefetch = 0 : i64, scratch_operands = 0 : i64, tpu.core_type = #tpu.core_type<tc>} {
    %0 = tpu.iota {dimensions = array<i32: 1>} : vector<16x32xi32>
    %1 = tpu.iota {dimensions = array<i32: 0>} : vector<16x32xi32>
    %c0_i32 = arith.constant 0 : i32
    %2 = vector.broadcast %c0_i32 : i32 to vector<16x32xi32>
    %3 = arith.addi %1, %2 : vector<16x32xi32>
    %4 = arith.cmpi eq, %0, %3 : vector<16x32xi32>
    %5 = arith.extui %4 : vector<16x32xi1> to vector<16x32xi32>
    %6 = arith.sitofp %5 : vector<16x32xi32> to vector<16x32xf32>
    %c0 = arith.constant 0 : index
    %c0_0 = arith.constant 0 : index
    %c0_1 = arith.constant 0 : index
    %7 = vector.load %arg0[%c0, %c0_0, %c0_1] : memref<2x4x16xf32, #tpu.memory_space<vmem>>, vector<1x4x16xf32>
    %8 = vector.shape_cast %7 : vector<1x4x16xf32> to vector<4x16xf32>
    %cst = arith.constant dense<0.000000e+00> : vector<4x32xf32>
    %9 = tpu.matmul %8, %6, %cst {dimension_numbers = #tpu.dot_dimension_numbers<[1], [0], [0], [1], [0, 0, 1, 1], [], []>} : vector<4x16xf32>, vector<16x32xf32>, vector<4x32xf32> -> vector<4x32xf32>
    %c16_i32 = arith.constant 16 : i32
    %10 = vector.broadcast %c16_i32 : i32 to vector<16x32xi32>
    %11 = arith.addi %1, %10 : vector<16x32xi32>
    %12 = arith.cmpi eq, %0, %11 : vector<16x32xi32>
    %13 = arith.extui %12 : vector<16x32xi1> to vector<16x32xi32>
    %14 = arith.sitofp %13 : vector<16x32xi32> to vector<16x32xf32>
    %c1 = arith.constant 1 : index
    %c0_2 = arith.constant 0 : index
    %c0_3 = arith.constant 0 : index
    %15 = vector.load %arg0[%c1, %c0_2, %c0_3] : memref<2x4x16xf32, #tpu.memory_space<vmem>>, vector<1x4x16xf32>
    %16 = vector.shape_cast %15 : vector<1x4x16xf32> to vector<4x16xf32>
    %cst_4 = arith.constant dense<0.000000e+00> : vector<4x32xf32>
    %17 = tpu.matmul %16, %14, %cst_4 {dimension_numbers = #tpu.dot_dimension_numbers<[1], [0], [0], [1], [0, 0, 1, 1], [], []>} : vector<4x16xf32>, vector<16x32xf32>, vector<4x32xf32> -> vector<4x32xf32>
    %18 = arith.addf %9, %17 : vector<4x32xf32>
    %c0_5 = arith.constant 0 : index
    %c0_6 = arith.constant 0 : index
    %19 = vector.load %arg1[%c0_5, %c0_6] : memref<45x16xf32, #tpu.memory_space<vmem>>, vector<4x4xf32>
    %c0_7 = arith.constant 0 : index
    %c4 = arith.constant 4 : index
    %20 = vector.load %arg1[%c0_7, %c4] : memref<45x16xf32, #tpu.memory_space<vmem>>, vector<4x1xf32>
    %c0_8 = arith.constant 0 : index
    %c5 = arith.constant 5 : index
    %21 = vector.load %arg1[%c0_8, %c5] : memref<45x16xf32, #tpu.memory_space<vmem>>, vector<4x1xf32>
    %22 = vector.extract_strided_slice %19 {offsets = [0, 0], sizes = [4, 1], strides = [1, 1]} : vector<4x4xf32> to vector<4x1xf32>
    %23 = vector.extract_strided_slice %18 {offsets = [0, 0], sizes = [1, 32], strides = [1, 1]} : vector<4x32xf32> to vector<1x32xf32>
    %24 = vector.broadcast %22 : vector<4x1xf32> to vector<4x32xf32>
    %25 = vector.broadcast %23 : vector<1x32xf32> to vector<4x32xf32>
    %26 = arith.mulf %24, %25 : vector<4x32xf32>
    %27 = vector.extract_strided_slice %19 {offsets = [0, 1], sizes = [4, 1], strides = [1, 1]} : vector<4x4xf32> to vector<4x1xf32>
    %28 = vector.extract_strided_slice %18 {offsets = [1, 0], sizes = [1, 32], strides = [1, 1]} : vector<4x32xf32> to vector<1x32xf32>
    %29 = vector.broadcast %27 : vector<4x1xf32> to vector<4x32xf32>
    %30 = vector.broadcast %28 : vector<1x32xf32> to vector<4x32xf32>
    %31 = arith.mulf %29, %30 : vector<4x32xf32>
    %32 = arith.addf %26, %31 : vector<4x32xf32>
    %33 = vector.extract_strided_slice %19 {offsets = [0, 2], sizes = [4, 1], strides = [1, 1]} : vector<4x4xf32> to vector<4x1xf32>
    %34 = vector.extract_strided_slice %18 {offsets = [2, 0], sizes = [1, 32], strides = [1, 1]} : vector<4x32xf32> to vector<1x32xf32>
    %35 = vector.broadcast %33 : vector<4x1xf32> to vector<4x32xf32>
    %36 = vector.broadcast %34 : vector<1x32xf32> to vector<4x32xf32>
    %37 = arith.mulf %35, %36 : vector<4x32xf32>
    %38 = arith.addf %32, %37 : vector<4x32xf32>
    %39 = vector.extract_strided_slice %19 {offsets = [0, 3], sizes = [4, 1], strides = [1, 1]} : vector<4x4xf32> to vector<4x1xf32>
    %40 = vector.extract_strided_slice %18 {offsets = [3, 0], sizes = [1, 32], strides = [1, 1]} : vector<4x32xf32> to vector<1x32xf32>
    %41 = vector.broadcast %39 : vector<4x1xf32> to vector<4x32xf32>
    %42 = vector.broadcast %40 : vector<1x32xf32> to vector<4x32xf32>
    %43 = arith.mulf %41, %42 : vector<4x32xf32>
    %44 = arith.addf %38, %43 : vector<4x32xf32>
    %45 = arith.mulf %44, %44 : vector<4x32xf32>
    %46 = vector.shape_cast %44 : vector<4x32xf32> to vector<1x4x32xf32>
    %47 = vector.shape_cast %45 : vector<4x32xf32> to vector<1x4x32xf32>
    %48 = tpu.concatenate %46, %47 in 0 : vector<1x4x32xf32>, vector<1x4x32xf32> -> vector<2x4x32xf32>
    %cst_9 = arith.constant dense<0.000000e+00> : vector<2x4xf32>
    %49 = vector.multi_reduction <add>, %48, %cst_9 [2] : vector<2x4x32xf32> to vector<2x4xf32>
    %50 = vector.shape_cast %49 : vector<2x4xf32> to vector<2x4x1xf32>
    %cst_10 = arith.constant 3.125000e-02 : f32
    %51 = vector.broadcast %cst_10 : f32 to vector<2x4x1xf32>
    %52 = arith.mulf %50, %51 : vector<2x4x1xf32>
    %53 = vector.extract_strided_slice %52 {offsets = [0, 0, 0], sizes = [1, 4, 1], strides = [1, 1, 1]} : vector<2x4x1xf32> to vector<1x4x1xf32>
    %54 = vector.shape_cast %53 : vector<1x4x1xf32> to vector<4x1xf32>
    %55 = vector.extract_strided_slice %52 {offsets = [1, 0, 0], sizes = [1, 4, 1], strides = [1, 1, 1]} : vector<2x4x1xf32> to vector<1x4x1xf32>
    %56 = vector.shape_cast %55 : vector<1x4x1xf32> to vector<4x1xf32>
    %57 = arith.mulf %54, %54 : vector<4x1xf32>
    %58 = arith.subf %56, %57 : vector<4x1xf32>
    %cst_11 = arith.constant 0.000000e+00 : f32
    %59 = vector.broadcast %cst_11 : f32 to vector<4x1xf32>
    %60 = arith.maximumf %58, %59 : vector<4x1xf32>
    %61 = vector.broadcast %54 : vector<4x1xf32> to vector<4x32xf32>
    %62 = arith.subf %44, %61 : vector<4x32xf32>
    %cst_12 = arith.constant 9.99999974E-6 : f32
    %63 = vector.broadcast %cst_12 : f32 to vector<4x1xf32>
    %64 = arith.addf %60, %63 : vector<4x1xf32>
    %65 = math.rsqrt %64 : vector<4x1xf32>
    %66 = vector.broadcast %65 : vector<4x1xf32> to vector<4x32xf32>
    %67 = arith.mulf %62, %66 : vector<4x32xf32>
    %68 = vector.broadcast %20 : vector<4x1xf32> to vector<4x32xf32>
    %69 = arith.mulf %67, %68 : vector<4x32xf32>
    %70 = vector.broadcast %21 : vector<4x1xf32> to vector<4x32xf32>
    %71 = arith.addf %69, %70 : vector<4x32xf32>
    %cst_13 = arith.constant 0.000000e+00 : f32
    %72 = vector.broadcast %cst_13 : f32 to vector<4x32xf32>
    %73 = arith.cmpf ogt, %71, %72 : vector<4x32xf32>
    %cst_14 = arith.constant 0.00999999977 : f32
    %74 = vector.broadcast %cst_14 : f32 to vector<4x32xf32>
    %75 = arith.mulf %74, %71 : vector<4x32xf32>
    %76 = arith.select %73, %71, %75 : vector<4x32xi1>, vector<4x32xf32>
    %77 = tpu.iota {dimensions = array<i32: 0>} : vector<32x16xi32>
    %78 = tpu.iota {dimensions = array<i32: 1>} : vector<1x16xi32>
    %c3_i32 = arith.constant 3 : i32
    %79 = vector.broadcast %c3_i32 : i32 to vector<1x16xi32>
    %80 = arith.shrsi %78, %79 : vector<1x16xi32>
    %c7_i32 = arith.constant 7 : i32
    %81 = vector.broadcast %c7_i32 : i32 to vector<1x16xi32>
    %82 = arith.andi %78, %81 : vector<1x16xi32>
    %83 = tpu.iota {dimensions = array<i32: 0>} : vector<4x16xi32>
    %c0_15 = arith.constant 0 : index
    %c0_16 = arith.constant 0 : index
    %84 = vector.load %arg2[%c0_15, %c0_16] : memref<8x16xi32, #tpu.memory_space<vmem>>, vector<1x16xi32>
    %c8_i32 = arith.constant 8 : i32
    %85 = vector.broadcast %c8_i32 : i32 to vector<1x16xi32>
    %86 = arith.muli %85, %82 : vector<1x16xi32>
    %c0_i32_17 = arith.constant 0 : i32
    %87 = vector.broadcast %c0_i32_17 : i32 to vector<1x16xi32>
    %88 = arith.addi %86, %87 : vector<1x16xi32>
    %89 = arith.addi %88, %84 : vector<1x16xi32>
    %c15_i32 = arith.constant 15 : i32
    %90 = vector.broadcast %c15_i32 : i32 to vector<1x16xi32>
    %91 = arith.andi %89, %90 : vector<1x16xi32>
    %c4_i32 = arith.constant 4 : i32
    %92 = vector.broadcast %c4_i32 : i32 to vector<1x16xi32>
    %93 = arith.shrsi %89, %92 : vector<1x16xi32>
    %c16_i32_18 = arith.constant 16 : i32
    %94 = vector.broadcast %c16_i32_18 : i32 to vector<1x16xi32>
    %95 = arith.muli %80, %94 : vector<1x16xi32>
    %96 = arith.addi %95, %91 : vector<1x16xi32>
    %97 = vector.broadcast %96 : vector<1x16xi32> to vector<32x16xi32>
    %98 = arith.cmpi eq, %77, %97 : vector<32x16xi32>
    %99 = arith.extui %98 : vector<32x16xi1> to vector<32x16xi32>
    %100 = arith.sitofp %99 : vector<32x16xi32> to vector<32x16xf32>
    %cst_19 = arith.constant dense<0.000000e+00> : vector<4x16xf32>
    %101 = tpu.matmul %76, %100, %cst_19 {dimension_numbers = #tpu.dot_dimension_numbers<[1], [0], [0], [1], [0, 0, 1, 1], [], []>} : vector<4x32xf32>, vector<32x16xf32>, vector<4x16xf32> -> vector<4x16xf32>
    %102 = vector.broadcast %93 : vector<1x16xi32> to vector<4x16xi32>
    %103 = arith.cmpi eq, %83, %102 : vector<4x16xi32>
    %104 = arith.extui %103 : vector<4x16xi1> to vector<4x16xi32>
    %105 = arith.sitofp %104 : vector<4x16xi32> to vector<4x16xf32>
    %106 = arith.mulf %101, %105 : vector<4x16xf32>
    %cst_20 = arith.constant dense<0.000000e+00> : vector<16xf32>
    %107 = vector.multi_reduction <add>, %106, %cst_20 [0] : vector<4x16xf32> to vector<16xf32>
    %108 = vector.shape_cast %107 : vector<16xf32> to vector<1x16xf32>
    %c1_21 = arith.constant 1 : index
    %c0_22 = arith.constant 0 : index
    %109 = vector.load %arg2[%c1_21, %c0_22] : memref<8x16xi32, #tpu.memory_space<vmem>>, vector<1x16xi32>
    %c8_i32_23 = arith.constant 8 : i32
    %110 = vector.broadcast %c8_i32_23 : i32 to vector<1x16xi32>
    %111 = arith.muli %110, %82 : vector<1x16xi32>
    %c4_i32_24 = arith.constant 4 : i32
    %112 = vector.broadcast %c4_i32_24 : i32 to vector<1x16xi32>
    %113 = arith.addi %111, %112 : vector<1x16xi32>
    %114 = arith.addi %113, %109 : vector<1x16xi32>
    %c15_i32_25 = arith.constant 15 : i32
    %115 = vector.broadcast %c15_i32_25 : i32 to vector<1x16xi32>
    %116 = arith.andi %114, %115 : vector<1x16xi32>
    %c4_i32_26 = arith.constant 4 : i32
    %117 = vector.broadcast %c4_i32_26 : i32 to vector<1x16xi32>
    %118 = arith.shrsi %114, %117 : vector<1x16xi32>
    %c16_i32_27 = arith.constant 16 : i32
    %119 = vector.broadcast %c16_i32_27 : i32 to vector<1x16xi32>
    %120 = arith.muli %80, %119 : vector<1x16xi32>
    %121 = arith.addi %120, %116 : vector<1x16xi32>
    %122 = vector.broadcast %121 : vector<1x16xi32> to vector<32x16xi32>
    %123 = arith.cmpi eq, %77, %122 : vector<32x16xi32>
    %124 = arith.extui %123 : vector<32x16xi1> to vector<32x16xi32>
    %125 = arith.sitofp %124 : vector<32x16xi32> to vector<32x16xf32>
    %cst_28 = arith.constant dense<0.000000e+00> : vector<4x16xf32>
    %126 = tpu.matmul %76, %125, %cst_28 {dimension_numbers = #tpu.dot_dimension_numbers<[1], [0], [0], [1], [0, 0, 1, 1], [], []>} : vector<4x32xf32>, vector<32x16xf32>, vector<4x16xf32> -> vector<4x16xf32>
    %127 = vector.broadcast %118 : vector<1x16xi32> to vector<4x16xi32>
    %128 = arith.cmpi eq, %83, %127 : vector<4x16xi32>
    %129 = arith.extui %128 : vector<4x16xi1> to vector<4x16xi32>
    %130 = arith.sitofp %129 : vector<4x16xi32> to vector<4x16xf32>
    %131 = arith.mulf %126, %130 : vector<4x16xf32>
    %cst_29 = arith.constant dense<0.000000e+00> : vector<16xf32>
    %132 = vector.multi_reduction <add>, %131, %cst_29 [0] : vector<4x16xf32> to vector<16xf32>
    %133 = vector.shape_cast %132 : vector<16xf32> to vector<1x16xf32>
    %c4_30 = arith.constant 4 : index
    %c0_31 = arith.constant 0 : index
    %134 = vector.load %arg1[%c4_30, %c0_31] : memref<45x16xf32, #tpu.memory_space<vmem>>, vector<8x2xf32>
    %c4_32 = arith.constant 4 : index
    %c2 = arith.constant 2 : index
    %135 = vector.load %arg1[%c4_32, %c2] : memref<45x16xf32, #tpu.memory_space<vmem>>, vector<8x1xf32>
    %c4_33 = arith.constant 4 : index
    %c3 = arith.constant 3 : index
    %136 = vector.load %arg1[%c4_33, %c3] : memref<45x16xf32, #tpu.memory_space<vmem>>, vector<8x1xf32>
    %137 = vector.extract_strided_slice %134 {offsets = [0, 0], sizes = [8, 1], strides = [1, 1]} : vector<8x2xf32> to vector<8x1xf32>
    %138 = vector.broadcast %137 : vector<8x1xf32> to vector<8x16xf32>
    %139 = vector.broadcast %108 : vector<1x16xf32> to vector<8x16xf32>
    %140 = arith.mulf %138, %139 : vector<8x16xf32>
    %141 = vector.extract_strided_slice %134 {offsets = [0, 1], sizes = [8, 1], strides = [1, 1]} : vector<8x2xf32> to vector<8x1xf32>
    %142 = vector.broadcast %141 : vector<8x1xf32> to vector<8x16xf32>
    %143 = vector.broadcast %133 : vector<1x16xf32> to vector<8x16xf32>
    %144 = arith.mulf %142, %143 : vector<8x16xf32>
    %145 = arith.addf %140, %144 : vector<8x16xf32>
    %146 = arith.mulf %145, %145 : vector<8x16xf32>
    %147 = vector.shape_cast %145 : vector<8x16xf32> to vector<1x8x16xf32>
    %148 = vector.shape_cast %146 : vector<8x16xf32> to vector<1x8x16xf32>
    %149 = tpu.concatenate %147, %148 in 0 : vector<1x8x16xf32>, vector<1x8x16xf32> -> vector<2x8x16xf32>
    %cst_34 = arith.constant dense<0.000000e+00> : vector<2x8xf32>
    %150 = vector.multi_reduction <add>, %149, %cst_34 [2] : vector<2x8x16xf32> to vector<2x8xf32>
    %151 = vector.shape_cast %150 : vector<2x8xf32> to vector<2x8x1xf32>
    %cst_35 = arith.constant 6.250000e-02 : f32
    %152 = vector.broadcast %cst_35 : f32 to vector<2x8x1xf32>
    %153 = arith.mulf %151, %152 : vector<2x8x1xf32>
    %154 = vector.extract_strided_slice %153 {offsets = [0, 0, 0], sizes = [1, 8, 1], strides = [1, 1, 1]} : vector<2x8x1xf32> to vector<1x8x1xf32>
    %155 = vector.shape_cast %154 : vector<1x8x1xf32> to vector<8x1xf32>
    %156 = vector.extract_strided_slice %153 {offsets = [1, 0, 0], sizes = [1, 8, 1], strides = [1, 1, 1]} : vector<2x8x1xf32> to vector<1x8x1xf32>
    %157 = vector.shape_cast %156 : vector<1x8x1xf32> to vector<8x1xf32>
    %158 = arith.mulf %155, %155 : vector<8x1xf32>
    %159 = arith.subf %157, %158 : vector<8x1xf32>
    %cst_36 = arith.constant 0.000000e+00 : f32
    %160 = vector.broadcast %cst_36 : f32 to vector<8x1xf32>
    %161 = arith.maximumf %159, %160 : vector<8x1xf32>
    %162 = vector.broadcast %155 : vector<8x1xf32> to vector<8x16xf32>
    %163 = arith.subf %145, %162 : vector<8x16xf32>
    %cst_37 = arith.constant 9.99999974E-6 : f32
    %164 = vector.broadcast %cst_37 : f32 to vector<8x1xf32>
    %165 = arith.addf %161, %164 : vector<8x1xf32>
    %166 = math.rsqrt %165 : vector<8x1xf32>
    %167 = vector.broadcast %166 : vector<8x1xf32> to vector<8x16xf32>
    %168 = arith.mulf %163, %167 : vector<8x16xf32>
    %169 = vector.broadcast %135 : vector<8x1xf32> to vector<8x16xf32>
    %170 = arith.mulf %168, %169 : vector<8x16xf32>
    %171 = vector.broadcast %136 : vector<8x1xf32> to vector<8x16xf32>
    %172 = arith.addf %170, %171 : vector<8x16xf32>
    %cst_38 = arith.constant 0.000000e+00 : f32
    %173 = vector.broadcast %cst_38 : f32 to vector<8x16xf32>
    %174 = arith.cmpf ogt, %172, %173 : vector<8x16xf32>
    %cst_39 = arith.constant 0.00999999977 : f32
    %175 = vector.broadcast %cst_39 : f32 to vector<8x16xf32>
    %176 = arith.mulf %175, %172 : vector<8x16xf32>
    %177 = arith.select %174, %172, %176 : vector<8x16xi1>, vector<8x16xf32>
    %178 = tpu.iota {dimensions = array<i32: 0>} : vector<16x8xi32>
    %179 = tpu.iota {dimensions = array<i32: 1>} : vector<1x8xi32>
    %c2_i32 = arith.constant 2 : i32
    %180 = vector.broadcast %c2_i32 : i32 to vector<1x8xi32>
    %181 = arith.shrsi %179, %180 : vector<1x8xi32>
    %c3_i32_40 = arith.constant 3 : i32
    %182 = vector.broadcast %c3_i32_40 : i32 to vector<1x8xi32>
    %183 = arith.andi %179, %182 : vector<1x8xi32>
    %184 = tpu.iota {dimensions = array<i32: 0>} : vector<4x8xi32>
    %185 = tpu.iota {dimensions = array<i32: 0>} : vector<2x1xi32>
    %c2_41 = arith.constant 2 : index
    %c0_42 = arith.constant 0 : index
    %186 = vector.load %arg2[%c2_41, %c0_42] : memref<8x16xi32, #tpu.memory_space<vmem>>, vector<1x8xi32>
    %c8_i32_43 = arith.constant 8 : i32
    %187 = vector.broadcast %c8_i32_43 : i32 to vector<1x8xi32>
    %188 = arith.muli %187, %183 : vector<1x8xi32>
    %c0_i32_44 = arith.constant 0 : i32
    %189 = vector.broadcast %c0_i32_44 : i32 to vector<1x8xi32>
    %190 = arith.addi %188, %189 : vector<1x8xi32>
    %191 = arith.addi %190, %186 : vector<1x8xi32>
    %c7_i32_45 = arith.constant 7 : i32
    %192 = vector.broadcast %c7_i32_45 : i32 to vector<1x8xi32>
    %193 = arith.andi %191, %192 : vector<1x8xi32>
    %c3_i32_46 = arith.constant 3 : i32
    %194 = vector.broadcast %c3_i32_46 : i32 to vector<1x8xi32>
    %195 = arith.shrsi %191, %194 : vector<1x8xi32>
    %c8_i32_47 = arith.constant 8 : i32
    %196 = vector.broadcast %c8_i32_47 : i32 to vector<1x8xi32>
    %197 = arith.muli %181, %196 : vector<1x8xi32>
    %198 = arith.addi %197, %193 : vector<1x8xi32>
    %199 = vector.broadcast %198 : vector<1x8xi32> to vector<16x8xi32>
    %200 = arith.cmpi eq, %178, %199 : vector<16x8xi32>
    %201 = arith.extui %200 : vector<16x8xi1> to vector<16x8xi32>
    %202 = arith.sitofp %201 : vector<16x8xi32> to vector<16x8xf32>
    %cst_48 = arith.constant dense<0.000000e+00> : vector<8x8xf32>
    %203 = tpu.matmul %177, %202, %cst_48 {dimension_numbers = #tpu.dot_dimension_numbers<[1], [0], [0], [1], [0, 0, 1, 1], [], []>} : vector<8x16xf32>, vector<16x8xf32>, vector<8x8xf32> -> vector<8x8xf32>
    %204 = vector.broadcast %195 : vector<1x8xi32> to vector<4x8xi32>
    %205 = arith.cmpi eq, %184, %204 : vector<4x8xi32>
    %206 = arith.extui %205 : vector<4x8xi1> to vector<4x8xi32>
    %207 = arith.sitofp %206 : vector<4x8xi32> to vector<4x8xf32>
    %208 = vector.extract_strided_slice %203 {offsets = [0, 0], sizes = [4, 8], strides = [1, 1]} : vector<8x8xf32> to vector<4x8xf32>
    %209 = arith.mulf %208, %207 : vector<4x8xf32>
    %cst_49 = arith.constant dense<0.000000e+00> : vector<8xf32>
    %210 = vector.multi_reduction <add>, %209, %cst_49 [0] : vector<4x8xf32> to vector<8xf32>
    %211 = vector.shape_cast %210 : vector<8xf32> to vector<1x8xf32>
    %c0_i32_50 = arith.constant 0 : i32
    %212 = vector.broadcast %c0_i32_50 : i32 to vector<2x1xi32>
    %213 = arith.cmpi eq, %185, %212 : vector<2x1xi32>
    %214 = arith.extui %213 : vector<2x1xi1> to vector<2x1xi32>
    %215 = arith.sitofp %214 : vector<2x1xi32> to vector<2x1xf32>
    %216 = vector.broadcast %215 : vector<2x1xf32> to vector<2x8xf32>
    %217 = vector.broadcast %211 : vector<1x8xf32> to vector<2x8xf32>
    %218 = arith.mulf %216, %217 : vector<2x8xf32>
    %219 = vector.extract_strided_slice %203 {offsets = [4, 0], sizes = [4, 8], strides = [1, 1]} : vector<8x8xf32> to vector<4x8xf32>
    %220 = arith.mulf %219, %207 : vector<4x8xf32>
    %cst_51 = arith.constant dense<0.000000e+00> : vector<8xf32>
    %221 = vector.multi_reduction <add>, %220, %cst_51 [0] : vector<4x8xf32> to vector<8xf32>
    %222 = vector.shape_cast %221 : vector<8xf32> to vector<1x8xf32>
    %c1_i32 = arith.constant 1 : i32
    %223 = vector.broadcast %c1_i32 : i32 to vector<2x1xi32>
    %224 = arith.cmpi eq, %185, %223 : vector<2x1xi32>
    %225 = arith.extui %224 : vector<2x1xi1> to vector<2x1xi32>
    %226 = arith.sitofp %225 : vector<2x1xi32> to vector<2x1xf32>
    %227 = vector.broadcast %226 : vector<2x1xf32> to vector<2x8xf32>
    %228 = vector.broadcast %222 : vector<1x8xf32> to vector<2x8xf32>
    %229 = arith.mulf %227, %228 : vector<2x8xf32>
    %230 = arith.addf %218, %229 : vector<2x8xf32>
    %c3_52 = arith.constant 3 : index
    %c0_53 = arith.constant 0 : index
    %231 = vector.load %arg2[%c3_52, %c0_53] : memref<8x16xi32, #tpu.memory_space<vmem>>, vector<1x8xi32>
    %c8_i32_54 = arith.constant 8 : i32
    %232 = vector.broadcast %c8_i32_54 : i32 to vector<1x8xi32>
    %233 = arith.muli %232, %183 : vector<1x8xi32>
    %c4_i32_55 = arith.constant 4 : i32
    %234 = vector.broadcast %c4_i32_55 : i32 to vector<1x8xi32>
    %235 = arith.addi %233, %234 : vector<1x8xi32>
    %236 = arith.addi %235, %231 : vector<1x8xi32>
    %c7_i32_56 = arith.constant 7 : i32
    %237 = vector.broadcast %c7_i32_56 : i32 to vector<1x8xi32>
    %238 = arith.andi %236, %237 : vector<1x8xi32>
    %c3_i32_57 = arith.constant 3 : i32
    %239 = vector.broadcast %c3_i32_57 : i32 to vector<1x8xi32>
    %240 = arith.shrsi %236, %239 : vector<1x8xi32>
    %c8_i32_58 = arith.constant 8 : i32
    %241 = vector.broadcast %c8_i32_58 : i32 to vector<1x8xi32>
    %242 = arith.muli %181, %241 : vector<1x8xi32>
    %243 = arith.addi %242, %238 : vector<1x8xi32>
    %244 = vector.broadcast %243 : vector<1x8xi32> to vector<16x8xi32>
    %245 = arith.cmpi eq, %178, %244 : vector<16x8xi32>
    %246 = arith.extui %245 : vector<16x8xi1> to vector<16x8xi32>
    %247 = arith.sitofp %246 : vector<16x8xi32> to vector<16x8xf32>
    %cst_59 = arith.constant dense<0.000000e+00> : vector<8x8xf32>
    %248 = tpu.matmul %177, %247, %cst_59 {dimension_numbers = #tpu.dot_dimension_numbers<[1], [0], [0], [1], [0, 0, 1, 1], [], []>} : vector<8x16xf32>, vector<16x8xf32>, vector<8x8xf32> -> vector<8x8xf32>
    %249 = vector.broadcast %240 : vector<1x8xi32> to vector<4x8xi32>
    %250 = arith.cmpi eq, %184, %249 : vector<4x8xi32>
    %251 = arith.extui %250 : vector<4x8xi1> to vector<4x8xi32>
    %252 = arith.sitofp %251 : vector<4x8xi32> to vector<4x8xf32>
    %253 = vector.extract_strided_slice %248 {offsets = [0, 0], sizes = [4, 8], strides = [1, 1]} : vector<8x8xf32> to vector<4x8xf32>
    %254 = arith.mulf %253, %252 : vector<4x8xf32>
    %cst_60 = arith.constant dense<0.000000e+00> : vector<8xf32>
    %255 = vector.multi_reduction <add>, %254, %cst_60 [0] : vector<4x8xf32> to vector<8xf32>
    %256 = vector.shape_cast %255 : vector<8xf32> to vector<1x8xf32>
    %c0_i32_61 = arith.constant 0 : i32
    %257 = vector.broadcast %c0_i32_61 : i32 to vector<2x1xi32>
    %258 = arith.cmpi eq, %185, %257 : vector<2x1xi32>
    %259 = arith.extui %258 : vector<2x1xi1> to vector<2x1xi32>
    %260 = arith.sitofp %259 : vector<2x1xi32> to vector<2x1xf32>
    %261 = vector.broadcast %260 : vector<2x1xf32> to vector<2x8xf32>
    %262 = vector.broadcast %256 : vector<1x8xf32> to vector<2x8xf32>
    %263 = arith.mulf %261, %262 : vector<2x8xf32>
    %264 = vector.extract_strided_slice %248 {offsets = [4, 0], sizes = [4, 8], strides = [1, 1]} : vector<8x8xf32> to vector<4x8xf32>
    %265 = arith.mulf %264, %252 : vector<4x8xf32>
    %cst_62 = arith.constant dense<0.000000e+00> : vector<8xf32>
    %266 = vector.multi_reduction <add>, %265, %cst_62 [0] : vector<4x8xf32> to vector<8xf32>
    %267 = vector.shape_cast %266 : vector<8xf32> to vector<1x8xf32>
    %c1_i32_63 = arith.constant 1 : i32
    %268 = vector.broadcast %c1_i32_63 : i32 to vector<2x1xi32>
    %269 = arith.cmpi eq, %185, %268 : vector<2x1xi32>
    %270 = arith.extui %269 : vector<2x1xi1> to vector<2x1xi32>
    %271 = arith.sitofp %270 : vector<2x1xi32> to vector<2x1xf32>
    %272 = vector.broadcast %271 : vector<2x1xf32> to vector<2x8xf32>
    %273 = vector.broadcast %267 : vector<1x8xf32> to vector<2x8xf32>
    %274 = arith.mulf %272, %273 : vector<2x8xf32>
    %275 = arith.addf %263, %274 : vector<2x8xf32>
    %c12 = arith.constant 12 : index
    %c0_64 = arith.constant 0 : index
    %276 = vector.load %arg1[%c12, %c0_64] : memref<45x16xf32, #tpu.memory_space<vmem>>, vector<8x4xf32>
    %c12_65 = arith.constant 12 : index
    %c4_66 = arith.constant 4 : index
    %277 = vector.load %arg1[%c12_65, %c4_66] : memref<45x16xf32, #tpu.memory_space<vmem>>, vector<8x1xf32>
    %c12_67 = arith.constant 12 : index
    %c5_68 = arith.constant 5 : index
    %278 = vector.load %arg1[%c12_67, %c5_68] : memref<45x16xf32, #tpu.memory_space<vmem>>, vector<8x1xf32>
    %279 = vector.extract_strided_slice %276 {offsets = [0, 0], sizes = [8, 2], strides = [1, 1]} : vector<8x4xf32> to vector<8x2xf32>
    %280 = vector.extract_strided_slice %279 {offsets = [0, 0], sizes = [8, 1], strides = [1, 1]} : vector<8x2xf32> to vector<8x1xf32>
    %281 = vector.extract_strided_slice %230 {offsets = [0, 0], sizes = [1, 8], strides = [1, 1]} : vector<2x8xf32> to vector<1x8xf32>
    %282 = vector.broadcast %280 : vector<8x1xf32> to vector<8x8xf32>
    %283 = vector.broadcast %281 : vector<1x8xf32> to vector<8x8xf32>
    %284 = arith.mulf %282, %283 : vector<8x8xf32>
    %285 = vector.extract_strided_slice %279 {offsets = [0, 1], sizes = [8, 1], strides = [1, 1]} : vector<8x2xf32> to vector<8x1xf32>
    %286 = vector.extract_strided_slice %230 {offsets = [1, 0], sizes = [1, 8], strides = [1, 1]} : vector<2x8xf32> to vector<1x8xf32>
    %287 = vector.broadcast %285 : vector<8x1xf32> to vector<8x8xf32>
    %288 = vector.broadcast %286 : vector<1x8xf32> to vector<8x8xf32>
    %289 = arith.mulf %287, %288 : vector<8x8xf32>
    %290 = arith.addf %284, %289 : vector<8x8xf32>
    %291 = vector.extract_strided_slice %276 {offsets = [0, 2], sizes = [8, 2], strides = [1, 1]} : vector<8x4xf32> to vector<8x2xf32>
    %292 = vector.extract_strided_slice %291 {offsets = [0, 0], sizes = [8, 1], strides = [1, 1]} : vector<8x2xf32> to vector<8x1xf32>
    %293 = vector.extract_strided_slice %275 {offsets = [0, 0], sizes = [1, 8], strides = [1, 1]} : vector<2x8xf32> to vector<1x8xf32>
    %294 = vector.broadcast %292 : vector<8x1xf32> to vector<8x8xf32>
    %295 = vector.broadcast %293 : vector<1x8xf32> to vector<8x8xf32>
    %296 = arith.mulf %294, %295 : vector<8x8xf32>
    %297 = vector.extract_strided_slice %291 {offsets = [0, 1], sizes = [8, 1], strides = [1, 1]} : vector<8x2xf32> to vector<8x1xf32>
    %298 = vector.extract_strided_slice %275 {offsets = [1, 0], sizes = [1, 8], strides = [1, 1]} : vector<2x8xf32> to vector<1x8xf32>
    %299 = vector.broadcast %297 : vector<8x1xf32> to vector<8x8xf32>
    %300 = vector.broadcast %298 : vector<1x8xf32> to vector<8x8xf32>
    %301 = arith.mulf %299, %300 : vector<8x8xf32>
    %302 = arith.addf %296, %301 : vector<8x8xf32>
    %303 = arith.addf %290, %302 : vector<8x8xf32>
    %304 = arith.mulf %303, %303 : vector<8x8xf32>
    %305 = vector.shape_cast %303 : vector<8x8xf32> to vector<1x8x8xf32>
    %306 = vector.shape_cast %304 : vector<8x8xf32> to vector<1x8x8xf32>
    %307 = tpu.concatenate %305, %306 in 0 : vector<1x8x8xf32>, vector<1x8x8xf32> -> vector<2x8x8xf32>
    %cst_69 = arith.constant dense<0.000000e+00> : vector<2x8xf32>
    %308 = vector.multi_reduction <add>, %307, %cst_69 [2] : vector<2x8x8xf32> to vector<2x8xf32>
    %309 = vector.shape_cast %308 : vector<2x8xf32> to vector<2x8x1xf32>
    %cst_70 = arith.constant 1.250000e-01 : f32
    %310 = vector.broadcast %cst_70 : f32 to vector<2x8x1xf32>
    %311 = arith.mulf %309, %310 : vector<2x8x1xf32>
    %312 = vector.extract_strided_slice %311 {offsets = [0, 0, 0], sizes = [1, 8, 1], strides = [1, 1, 1]} : vector<2x8x1xf32> to vector<1x8x1xf32>
    %313 = vector.shape_cast %312 : vector<1x8x1xf32> to vector<8x1xf32>
    %314 = vector.extract_strided_slice %311 {offsets = [1, 0, 0], sizes = [1, 8, 1], strides = [1, 1, 1]} : vector<2x8x1xf32> to vector<1x8x1xf32>
    %315 = vector.shape_cast %314 : vector<1x8x1xf32> to vector<8x1xf32>
    %316 = arith.mulf %313, %313 : vector<8x1xf32>
    %317 = arith.subf %315, %316 : vector<8x1xf32>
    %cst_71 = arith.constant 0.000000e+00 : f32
    %318 = vector.broadcast %cst_71 : f32 to vector<8x1xf32>
    %319 = arith.maximumf %317, %318 : vector<8x1xf32>
    %320 = vector.broadcast %313 : vector<8x1xf32> to vector<8x8xf32>
    %321 = arith.subf %303, %320 : vector<8x8xf32>
    %cst_72 = arith.constant 9.99999974E-6 : f32
    %322 = vector.broadcast %cst_72 : f32 to vector<8x1xf32>
    %323 = arith.addf %319, %322 : vector<8x1xf32>
    %324 = math.rsqrt %323 : vector<8x1xf32>
    %325 = vector.broadcast %324 : vector<8x1xf32> to vector<8x8xf32>
    %326 = arith.mulf %321, %325 : vector<8x8xf32>
    %327 = vector.broadcast %277 : vector<8x1xf32> to vector<8x8xf32>
    %328 = arith.mulf %326, %327 : vector<8x8xf32>
    %329 = vector.broadcast %278 : vector<8x1xf32> to vector<8x8xf32>
    %330 = arith.addf %328, %329 : vector<8x8xf32>
    %cst_73 = arith.constant 0.000000e+00 : f32
    %331 = vector.broadcast %cst_73 : f32 to vector<8x8xf32>
    %332 = arith.cmpf ogt, %330, %331 : vector<8x8xf32>
    %cst_74 = arith.constant 0.00999999977 : f32
    %333 = vector.broadcast %cst_74 : f32 to vector<8x8xf32>
    %334 = arith.mulf %333, %330 : vector<8x8xf32>
    %335 = arith.select %332, %330, %334 : vector<8x8xi1>, vector<8x8xf32>
    %336 = tpu.iota {dimensions = array<i32: 0>} : vector<8x4xi32>
    %337 = tpu.iota {dimensions = array<i32: 1>} : vector<1x4xi32>
    %c1_i32_75 = arith.constant 1 : i32
    %338 = vector.broadcast %c1_i32_75 : i32 to vector<1x4xi32>
    %339 = arith.shrsi %337, %338 : vector<1x4xi32>
    %c1_i32_76 = arith.constant 1 : i32
    %340 = vector.broadcast %c1_i32_76 : i32 to vector<1x4xi32>
    %341 = arith.andi %337, %340 : vector<1x4xi32>
    %342 = tpu.iota {dimensions = array<i32: 0>} : vector<4x4xi32>
    %343 = tpu.iota {dimensions = array<i32: 0>} : vector<2x1xi32>
    %c4_77 = arith.constant 4 : index
    %c0_78 = arith.constant 0 : index
    %344 = vector.load %arg2[%c4_77, %c0_78] : memref<8x16xi32, #tpu.memory_space<vmem>>, vector<1x4xi32>
    %c8_i32_79 = arith.constant 8 : i32
    %345 = vector.broadcast %c8_i32_79 : i32 to vector<1x4xi32>
    %346 = arith.muli %345, %341 : vector<1x4xi32>
    %c0_i32_80 = arith.constant 0 : i32
    %347 = vector.broadcast %c0_i32_80 : i32 to vector<1x4xi32>
    %348 = arith.addi %346, %347 : vector<1x4xi32>
    %349 = arith.addi %348, %344 : vector<1x4xi32>
    %c3_i32_81 = arith.constant 3 : i32
    %350 = vector.broadcast %c3_i32_81 : i32 to vector<1x4xi32>
    %351 = arith.andi %349, %350 : vector<1x4xi32>
    %c2_i32_82 = arith.constant 2 : i32
    %352 = vector.broadcast %c2_i32_82 : i32 to vector<1x4xi32>
    %353 = arith.shrsi %349, %352 : vector<1x4xi32>
    %c4_i32_83 = arith.constant 4 : i32
    %354 = vector.broadcast %c4_i32_83 : i32 to vector<1x4xi32>
    %355 = arith.muli %339, %354 : vector<1x4xi32>
    %356 = arith.addi %355, %351 : vector<1x4xi32>
    %357 = vector.broadcast %356 : vector<1x4xi32> to vector<8x4xi32>
    %358 = arith.cmpi eq, %336, %357 : vector<8x4xi32>
    %359 = arith.extui %358 : vector<8x4xi1> to vector<8x4xi32>
    %360 = arith.sitofp %359 : vector<8x4xi32> to vector<8x4xf32>
    %361 = vector.extract_strided_slice %335 {offsets = [0, 0], sizes = [8, 1], strides = [1, 1]} : vector<8x8xf32> to vector<8x1xf32>
    %362 = vector.extract_strided_slice %360 {offsets = [0, 0], sizes = [1, 4], strides = [1, 1]} : vector<8x4xf32> to vector<1x4xf32>
    %363 = vector.broadcast %361 : vector<8x1xf32> to vector<8x4xf32>
    %364 = vector.broadcast %362 : vector<1x4xf32> to vector<8x4xf32>
    %365 = arith.mulf %363, %364 : vector<8x4xf32>
    %366 = vector.extract_strided_slice %335 {offsets = [0, 1], sizes = [8, 1], strides = [1, 1]} : vector<8x8xf32> to vector<8x1xf32>
    %367 = vector.extract_strided_slice %360 {offsets = [1, 0], sizes = [1, 4], strides = [1, 1]} : vector<8x4xf32> to vector<1x4xf32>
    %368 = vector.broadcast %366 : vector<8x1xf32> to vector<8x4xf32>
    %369 = vector.broadcast %367 : vector<1x4xf32> to vector<8x4xf32>
    %370 = arith.mulf %368, %369 : vector<8x4xf32>
    %371 = arith.addf %365, %370 : vector<8x4xf32>
    %372 = vector.extract_strided_slice %335 {offsets = [0, 2], sizes = [8, 1], strides = [1, 1]} : vector<8x8xf32> to vector<8x1xf32>
    %373 = vector.extract_strided_slice %360 {offsets = [2, 0], sizes = [1, 4], strides = [1, 1]} : vector<8x4xf32> to vector<1x4xf32>
    %374 = vector.broadcast %372 : vector<8x1xf32> to vector<8x4xf32>
    %375 = vector.broadcast %373 : vector<1x4xf32> to vector<8x4xf32>
    %376 = arith.mulf %374, %375 : vector<8x4xf32>
    %377 = arith.addf %371, %376 : vector<8x4xf32>
    %378 = vector.extract_strided_slice %335 {offsets = [0, 3], sizes = [8, 1], strides = [1, 1]} : vector<8x8xf32> to vector<8x1xf32>
    %379 = vector.extract_strided_slice %360 {offsets = [3, 0], sizes = [1, 4], strides = [1, 1]} : vector<8x4xf32> to vector<1x4xf32>
    %380 = vector.broadcast %378 : vector<8x1xf32> to vector<8x4xf32>
    %381 = vector.broadcast %379 : vector<1x4xf32> to vector<8x4xf32>
    %382 = arith.mulf %380, %381 : vector<8x4xf32>
    %383 = arith.addf %377, %382 : vector<8x4xf32>
    %384 = vector.extract_strided_slice %335 {offsets = [0, 4], sizes = [8, 1], strides = [1, 1]} : vector<8x8xf32> to vector<8x1xf32>
    %385 = vector.extract_strided_slice %360 {offsets = [4, 0], sizes = [1, 4], strides = [1, 1]} : vector<8x4xf32> to vector<1x4xf32>
    %386 = vector.broadcast %384 : vector<8x1xf32> to vector<8x4xf32>
    %387 = vector.broadcast %385 : vector<1x4xf32> to vector<8x4xf32>
    %388 = arith.mulf %386, %387 : vector<8x4xf32>
    %389 = arith.addf %383, %388 : vector<8x4xf32>
    %390 = vector.extract_strided_slice %335 {offsets = [0, 5], sizes = [8, 1], strides = [1, 1]} : vector<8x8xf32> to vector<8x1xf32>
    %391 = vector.extract_strided_slice %360 {offsets = [5, 0], sizes = [1, 4], strides = [1, 1]} : vector<8x4xf32> to vector<1x4xf32>
    %392 = vector.broadcast %390 : vector<8x1xf32> to vector<8x4xf32>
    %393 = vector.broadcast %391 : vector<1x4xf32> to vector<8x4xf32>
    %394 = arith.mulf %392, %393 : vector<8x4xf32>
    %395 = arith.addf %389, %394 : vector<8x4xf32>
    %396 = vector.extract_strided_slice %335 {offsets = [0, 6], sizes = [8, 1], strides = [1, 1]} : vector<8x8xf32> to vector<8x1xf32>
    %397 = vector.extract_strided_slice %360 {offsets = [6, 0], sizes = [1, 4], strides = [1, 1]} : vector<8x4xf32> to vector<1x4xf32>
    %398 = vector.broadcast %396 : vector<8x1xf32> to vector<8x4xf32>
    %399 = vector.broadcast %397 : vector<1x4xf32> to vector<8x4xf32>
    %400 = arith.mulf %398, %399 : vector<8x4xf32>
    %401 = arith.addf %395, %400 : vector<8x4xf32>
    %402 = vector.extract_strided_slice %335 {offsets = [0, 7], sizes = [8, 1], strides = [1, 1]} : vector<8x8xf32> to vector<8x1xf32>
    %403 = vector.extract_strided_slice %360 {offsets = [7, 0], sizes = [1, 4], strides = [1, 1]} : vector<8x4xf32> to vector<1x4xf32>
    %404 = vector.broadcast %402 : vector<8x1xf32> to vector<8x4xf32>
    %405 = vector.broadcast %403 : vector<1x4xf32> to vector<8x4xf32>
    %406 = arith.mulf %404, %405 : vector<8x4xf32>
    %407 = arith.addf %401, %406 : vector<8x4xf32>
    %408 = vector.broadcast %353 : vector<1x4xi32> to vector<4x4xi32>
    %409 = arith.cmpi eq, %342, %408 : vector<4x4xi32>
    %410 = arith.extui %409 : vector<4x4xi1> to vector<4x4xi32>
    %411 = arith.sitofp %410 : vector<4x4xi32> to vector<4x4xf32>
    %412 = vector.extract_strided_slice %407 {offsets = [0, 0], sizes = [4, 4], strides = [1, 1]} : vector<8x4xf32> to vector<4x4xf32>
    %413 = arith.mulf %412, %411 : vector<4x4xf32>
    %cst_84 = arith.constant dense<0.000000e+00> : vector<4xf32>
    %414 = vector.multi_reduction <add>, %413, %cst_84 [0] : vector<4x4xf32> to vector<4xf32>
    %415 = vector.shape_cast %414 : vector<4xf32> to vector<1x4xf32>
    %c0_i32_85 = arith.constant 0 : i32
    %416 = vector.broadcast %c0_i32_85 : i32 to vector<2x1xi32>
    %417 = arith.cmpi eq, %343, %416 : vector<2x1xi32>
    %418 = arith.extui %417 : vector<2x1xi1> to vector<2x1xi32>
    %419 = arith.sitofp %418 : vector<2x1xi32> to vector<2x1xf32>
    %420 = vector.broadcast %419 : vector<2x1xf32> to vector<2x4xf32>
    %421 = vector.broadcast %415 : vector<1x4xf32> to vector<2x4xf32>
    %422 = arith.mulf %420, %421 : vector<2x4xf32>
    %423 = vector.extract_strided_slice %407 {offsets = [4, 0], sizes = [4, 4], strides = [1, 1]} : vector<8x4xf32> to vector<4x4xf32>
    %424 = arith.mulf %423, %411 : vector<4x4xf32>
    %cst_86 = arith.constant dense<0.000000e+00> : vector<4xf32>
    %425 = vector.multi_reduction <add>, %424, %cst_86 [0] : vector<4x4xf32> to vector<4xf32>
    %426 = vector.shape_cast %425 : vector<4xf32> to vector<1x4xf32>
    %c1_i32_87 = arith.constant 1 : i32
    %427 = vector.broadcast %c1_i32_87 : i32 to vector<2x1xi32>
    %428 = arith.cmpi eq, %343, %427 : vector<2x1xi32>
    %429 = arith.extui %428 : vector<2x1xi1> to vector<2x1xi32>
    %430 = arith.sitofp %429 : vector<2x1xi32> to vector<2x1xf32>
    %431 = vector.broadcast %430 : vector<2x1xf32> to vector<2x4xf32>
    %432 = vector.broadcast %426 : vector<1x4xf32> to vector<2x4xf32>
    %433 = arith.mulf %431, %432 : vector<2x4xf32>
    %434 = arith.addf %422, %433 : vector<2x4xf32>
    %c5_88 = arith.constant 5 : index
    %c0_89 = arith.constant 0 : index
    %435 = vector.load %arg2[%c5_88, %c0_89] : memref<8x16xi32, #tpu.memory_space<vmem>>, vector<1x4xi32>
    %c8_i32_90 = arith.constant 8 : i32
    %436 = vector.broadcast %c8_i32_90 : i32 to vector<1x4xi32>
    %437 = arith.muli %436, %341 : vector<1x4xi32>
    %c4_i32_91 = arith.constant 4 : i32
    %438 = vector.broadcast %c4_i32_91 : i32 to vector<1x4xi32>
    %439 = arith.addi %437, %438 : vector<1x4xi32>
    %440 = arith.addi %439, %435 : vector<1x4xi32>
    %c3_i32_92 = arith.constant 3 : i32
    %441 = vector.broadcast %c3_i32_92 : i32 to vector<1x4xi32>
    %442 = arith.andi %440, %441 : vector<1x4xi32>
    %c2_i32_93 = arith.constant 2 : i32
    %443 = vector.broadcast %c2_i32_93 : i32 to vector<1x4xi32>
    %444 = arith.shrsi %440, %443 : vector<1x4xi32>
    %c4_i32_94 = arith.constant 4 : i32
    %445 = vector.broadcast %c4_i32_94 : i32 to vector<1x4xi32>
    %446 = arith.muli %339, %445 : vector<1x4xi32>
    %447 = arith.addi %446, %442 : vector<1x4xi32>
    %448 = vector.broadcast %447 : vector<1x4xi32> to vector<8x4xi32>
    %449 = arith.cmpi eq, %336, %448 : vector<8x4xi32>
    %450 = arith.extui %449 : vector<8x4xi1> to vector<8x4xi32>
    %451 = arith.sitofp %450 : vector<8x4xi32> to vector<8x4xf32>
    %452 = vector.extract_strided_slice %335 {offsets = [0, 0], sizes = [8, 1], strides = [1, 1]} : vector<8x8xf32> to vector<8x1xf32>
    %453 = vector.extract_strided_slice %451 {offsets = [0, 0], sizes = [1, 4], strides = [1, 1]} : vector<8x4xf32> to vector<1x4xf32>
    %454 = vector.broadcast %452 : vector<8x1xf32> to vector<8x4xf32>
    %455 = vector.broadcast %453 : vector<1x4xf32> to vector<8x4xf32>
    %456 = arith.mulf %454, %455 : vector<8x4xf32>
    %457 = vector.extract_strided_slice %335 {offsets = [0, 1], sizes = [8, 1], strides = [1, 1]} : vector<8x8xf32> to vector<8x1xf32>
    %458 = vector.extract_strided_slice %451 {offsets = [1, 0], sizes = [1, 4], strides = [1, 1]} : vector<8x4xf32> to vector<1x4xf32>
    %459 = vector.broadcast %457 : vector<8x1xf32> to vector<8x4xf32>
    %460 = vector.broadcast %458 : vector<1x4xf32> to vector<8x4xf32>
    %461 = arith.mulf %459, %460 : vector<8x4xf32>
    %462 = arith.addf %456, %461 : vector<8x4xf32>
    %463 = vector.extract_strided_slice %335 {offsets = [0, 2], sizes = [8, 1], strides = [1, 1]} : vector<8x8xf32> to vector<8x1xf32>
    %464 = vector.extract_strided_slice %451 {offsets = [2, 0], sizes = [1, 4], strides = [1, 1]} : vector<8x4xf32> to vector<1x4xf32>
    %465 = vector.broadcast %463 : vector<8x1xf32> to vector<8x4xf32>
    %466 = vector.broadcast %464 : vector<1x4xf32> to vector<8x4xf32>
    %467 = arith.mulf %465, %466 : vector<8x4xf32>
    %468 = arith.addf %462, %467 : vector<8x4xf32>
    %469 = vector.extract_strided_slice %335 {offsets = [0, 3], sizes = [8, 1], strides = [1, 1]} : vector<8x8xf32> to vector<8x1xf32>
    %470 = vector.extract_strided_slice %451 {offsets = [3, 0], sizes = [1, 4], strides = [1, 1]} : vector<8x4xf32> to vector<1x4xf32>
    %471 = vector.broadcast %469 : vector<8x1xf32> to vector<8x4xf32>
    %472 = vector.broadcast %470 : vector<1x4xf32> to vector<8x4xf32>
    %473 = arith.mulf %471, %472 : vector<8x4xf32>
    %474 = arith.addf %468, %473 : vector<8x4xf32>
    %475 = vector.extract_strided_slice %335 {offsets = [0, 4], sizes = [8, 1], strides = [1, 1]} : vector<8x8xf32> to vector<8x1xf32>
    %476 = vector.extract_strided_slice %451 {offsets = [4, 0], sizes = [1, 4], strides = [1, 1]} : vector<8x4xf32> to vector<1x4xf32>
    %477 = vector.broadcast %475 : vector<8x1xf32> to vector<8x4xf32>
    %478 = vector.broadcast %476 : vector<1x4xf32> to vector<8x4xf32>
    %479 = arith.mulf %477, %478 : vector<8x4xf32>
    %480 = arith.addf %474, %479 : vector<8x4xf32>
    %481 = vector.extract_strided_slice %335 {offsets = [0, 5], sizes = [8, 1], strides = [1, 1]} : vector<8x8xf32> to vector<8x1xf32>
    %482 = vector.extract_strided_slice %451 {offsets = [5, 0], sizes = [1, 4], strides = [1, 1]} : vector<8x4xf32> to vector<1x4xf32>
    %483 = vector.broadcast %481 : vector<8x1xf32> to vector<8x4xf32>
    %484 = vector.broadcast %482 : vector<1x4xf32> to vector<8x4xf32>
    %485 = arith.mulf %483, %484 : vector<8x4xf32>
    %486 = arith.addf %480, %485 : vector<8x4xf32>
    %487 = vector.extract_strided_slice %335 {offsets = [0, 6], sizes = [8, 1], strides = [1, 1]} : vector<8x8xf32> to vector<8x1xf32>
    %488 = vector.extract_strided_slice %451 {offsets = [6, 0], sizes = [1, 4], strides = [1, 1]} : vector<8x4xf32> to vector<1x4xf32>
    %489 = vector.broadcast %487 : vector<8x1xf32> to vector<8x4xf32>
    %490 = vector.broadcast %488 : vector<1x4xf32> to vector<8x4xf32>
    %491 = arith.mulf %489, %490 : vector<8x4xf32>
    %492 = arith.addf %486, %491 : vector<8x4xf32>
    %493 = vector.extract_strided_slice %335 {offsets = [0, 7], sizes = [8, 1], strides = [1, 1]} : vector<8x8xf32> to vector<8x1xf32>
    %494 = vector.extract_strided_slice %451 {offsets = [7, 0], sizes = [1, 4], strides = [1, 1]} : vector<8x4xf32> to vector<1x4xf32>
    %495 = vector.broadcast %493 : vector<8x1xf32> to vector<8x4xf32>
    %496 = vector.broadcast %494 : vector<1x4xf32> to vector<8x4xf32>
    %497 = arith.mulf %495, %496 : vector<8x4xf32>
    %498 = arith.addf %492, %497 : vector<8x4xf32>
    %499 = vector.broadcast %444 : vector<1x4xi32> to vector<4x4xi32>
    %500 = arith.cmpi eq, %342, %499 : vector<4x4xi32>
    %501 = arith.extui %500 : vector<4x4xi1> to vector<4x4xi32>
    %502 = arith.sitofp %501 : vector<4x4xi32> to vector<4x4xf32>
    %503 = vector.extract_strided_slice %498 {offsets = [0, 0], sizes = [4, 4], strides = [1, 1]} : vector<8x4xf32> to vector<4x4xf32>
    %504 = arith.mulf %503, %502 : vector<4x4xf32>
    %cst_95 = arith.constant dense<0.000000e+00> : vector<4xf32>
    %505 = vector.multi_reduction <add>, %504, %cst_95 [0] : vector<4x4xf32> to vector<4xf32>
    %506 = vector.shape_cast %505 : vector<4xf32> to vector<1x4xf32>
    %c0_i32_96 = arith.constant 0 : i32
    %507 = vector.broadcast %c0_i32_96 : i32 to vector<2x1xi32>
    %508 = arith.cmpi eq, %343, %507 : vector<2x1xi32>
    %509 = arith.extui %508 : vector<2x1xi1> to vector<2x1xi32>
    %510 = arith.sitofp %509 : vector<2x1xi32> to vector<2x1xf32>
    %511 = vector.broadcast %510 : vector<2x1xf32> to vector<2x4xf32>
    %512 = vector.broadcast %506 : vector<1x4xf32> to vector<2x4xf32>
    %513 = arith.mulf %511, %512 : vector<2x4xf32>
    %514 = vector.extract_strided_slice %498 {offsets = [4, 0], sizes = [4, 4], strides = [1, 1]} : vector<8x4xf32> to vector<4x4xf32>
    %515 = arith.mulf %514, %502 : vector<4x4xf32>
    %cst_97 = arith.constant dense<0.000000e+00> : vector<4xf32>
    %516 = vector.multi_reduction <add>, %515, %cst_97 [0] : vector<4x4xf32> to vector<4xf32>
    %517 = vector.shape_cast %516 : vector<4xf32> to vector<1x4xf32>
    %c1_i32_98 = arith.constant 1 : i32
    %518 = vector.broadcast %c1_i32_98 : i32 to vector<2x1xi32>
    %519 = arith.cmpi eq, %343, %518 : vector<2x1xi32>
    %520 = arith.extui %519 : vector<2x1xi1> to vector<2x1xi32>
    %521 = arith.sitofp %520 : vector<2x1xi32> to vector<2x1xf32>
    %522 = vector.broadcast %521 : vector<2x1xf32> to vector<2x4xf32>
    %523 = vector.broadcast %517 : vector<1x4xf32> to vector<2x4xf32>
    %524 = arith.mulf %522, %523 : vector<2x4xf32>
    %525 = arith.addf %513, %524 : vector<2x4xf32>
    %c20 = arith.constant 20 : index
    %c0_99 = arith.constant 0 : index
    %526 = vector.load %arg1[%c20, %c0_99] : memref<45x16xf32, #tpu.memory_space<vmem>>, vector<16x4xf32>
    %c20_100 = arith.constant 20 : index
    %c4_101 = arith.constant 4 : index
    %527 = vector.load %arg1[%c20_100, %c4_101] : memref<45x16xf32, #tpu.memory_space<vmem>>, vector<16x1xf32>
    %c20_102 = arith.constant 20 : index
    %c5_103 = arith.constant 5 : index
    %528 = vector.load %arg1[%c20_102, %c5_103] : memref<45x16xf32, #tpu.memory_space<vmem>>, vector<16x1xf32>
    %529 = vector.extract_strided_slice %526 {offsets = [0, 0], sizes = [16, 2], strides = [1, 1]} : vector<16x4xf32> to vector<16x2xf32>
    %530 = vector.extract_strided_slice %529 {offsets = [0, 0], sizes = [16, 1], strides = [1, 1]} : vector<16x2xf32> to vector<16x1xf32>
    %531 = vector.extract_strided_slice %434 {offsets = [0, 0], sizes = [1, 4], strides = [1, 1]} : vector<2x4xf32> to vector<1x4xf32>
    %532 = vector.broadcast %530 : vector<16x1xf32> to vector<16x4xf32>
    %533 = vector.broadcast %531 : vector<1x4xf32> to vector<16x4xf32>
    %534 = arith.mulf %532, %533 : vector<16x4xf32>
    %535 = vector.extract_strided_slice %529 {offsets = [0, 1], sizes = [16, 1], strides = [1, 1]} : vector<16x2xf32> to vector<16x1xf32>
    %536 = vector.extract_strided_slice %434 {offsets = [1, 0], sizes = [1, 4], strides = [1, 1]} : vector<2x4xf32> to vector<1x4xf32>
    %537 = vector.broadcast %535 : vector<16x1xf32> to vector<16x4xf32>
    %538 = vector.broadcast %536 : vector<1x4xf32> to vector<16x4xf32>
    %539 = arith.mulf %537, %538 : vector<16x4xf32>
    %540 = arith.addf %534, %539 : vector<16x4xf32>
    %541 = vector.extract_strided_slice %526 {offsets = [0, 2], sizes = [16, 2], strides = [1, 1]} : vector<16x4xf32> to vector<16x2xf32>
    %542 = vector.extract_strided_slice %541 {offsets = [0, 0], sizes = [16, 1], strides = [1, 1]} : vector<16x2xf32> to vector<16x1xf32>
    %543 = vector.extract_strided_slice %525 {offsets = [0, 0], sizes = [1, 4], strides = [1, 1]} : vector<2x4xf32> to vector<1x4xf32>
    %544 = vector.broadcast %542 : vector<16x1xf32> to vector<16x4xf32>
    %545 = vector.broadcast %543 : vector<1x4xf32> to vector<16x4xf32>
    %546 = arith.mulf %544, %545 : vector<16x4xf32>
    %547 = vector.extract_strided_slice %541 {offsets = [0, 1], sizes = [16, 1], strides = [1, 1]} : vector<16x2xf32> to vector<16x1xf32>
    %548 = vector.extract_strided_slice %525 {offsets = [1, 0], sizes = [1, 4], strides = [1, 1]} : vector<2x4xf32> to vector<1x4xf32>
    %549 = vector.broadcast %547 : vector<16x1xf32> to vector<16x4xf32>
    %550 = vector.broadcast %548 : vector<1x4xf32> to vector<16x4xf32>
    %551 = arith.mulf %549, %550 : vector<16x4xf32>
    %552 = arith.addf %546, %551 : vector<16x4xf32>
    %553 = arith.addf %540, %552 : vector<16x4xf32>
    %554 = arith.mulf %553, %553 : vector<16x4xf32>
    %555 = vector.shape_cast %553 : vector<16x4xf32> to vector<1x16x4xf32>
    %556 = vector.shape_cast %554 : vector<16x4xf32> to vector<1x16x4xf32>
    %557 = tpu.concatenate %555, %556 in 0 : vector<1x16x4xf32>, vector<1x16x4xf32> -> vector<2x16x4xf32>
    %cst_104 = arith.constant dense<0.000000e+00> : vector<2x16xf32>
    %558 = vector.multi_reduction <add>, %557, %cst_104 [2] : vector<2x16x4xf32> to vector<2x16xf32>
    %559 = vector.shape_cast %558 : vector<2x16xf32> to vector<2x16x1xf32>
    %cst_105 = arith.constant 2.500000e-01 : f32
    %560 = vector.broadcast %cst_105 : f32 to vector<2x16x1xf32>
    %561 = arith.mulf %559, %560 : vector<2x16x1xf32>
    %562 = vector.extract_strided_slice %561 {offsets = [0, 0, 0], sizes = [1, 16, 1], strides = [1, 1, 1]} : vector<2x16x1xf32> to vector<1x16x1xf32>
    %563 = vector.shape_cast %562 : vector<1x16x1xf32> to vector<16x1xf32>
    %564 = vector.extract_strided_slice %561 {offsets = [1, 0, 0], sizes = [1, 16, 1], strides = [1, 1, 1]} : vector<2x16x1xf32> to vector<1x16x1xf32>
    %565 = vector.shape_cast %564 : vector<1x16x1xf32> to vector<16x1xf32>
    %566 = arith.mulf %563, %563 : vector<16x1xf32>
    %567 = arith.subf %565, %566 : vector<16x1xf32>
    %cst_106 = arith.constant 0.000000e+00 : f32
    %568 = vector.broadcast %cst_106 : f32 to vector<16x1xf32>
    %569 = arith.maximumf %567, %568 : vector<16x1xf32>
    %570 = vector.broadcast %563 : vector<16x1xf32> to vector<16x4xf32>
    %571 = arith.subf %553, %570 : vector<16x4xf32>
    %cst_107 = arith.constant 9.99999974E-6 : f32
    %572 = vector.broadcast %cst_107 : f32 to vector<16x1xf32>
    %573 = arith.addf %569, %572 : vector<16x1xf32>
    %574 = math.rsqrt %573 : vector<16x1xf32>
    %575 = vector.broadcast %574 : vector<16x1xf32> to vector<16x4xf32>
    %576 = arith.mulf %571, %575 : vector<16x4xf32>
    %577 = vector.broadcast %527 : vector<16x1xf32> to vector<16x4xf32>
    %578 = arith.mulf %576, %577 : vector<16x4xf32>
    %579 = vector.broadcast %528 : vector<16x1xf32> to vector<16x4xf32>
    %580 = arith.addf %578, %579 : vector<16x4xf32>
    %cst_108 = arith.constant 0.000000e+00 : f32
    %581 = vector.broadcast %cst_108 : f32 to vector<16x4xf32>
    %582 = arith.cmpf ogt, %580, %581 : vector<16x4xf32>
    %cst_109 = arith.constant 0.00999999977 : f32
    %583 = vector.broadcast %cst_109 : f32 to vector<16x4xf32>
    %584 = arith.mulf %583, %580 : vector<16x4xf32>
    %585 = arith.select %582, %580, %584 : vector<16x4xi1>, vector<16x4xf32>
    %586 = tpu.iota {dimensions = array<i32: 0>} : vector<4x2xi32>
    %587 = tpu.iota {dimensions = array<i32: 1>} : vector<1x2xi32>
    %c0_i32_110 = arith.constant 0 : i32
    %588 = vector.broadcast %c0_i32_110 : i32 to vector<1x2xi32>
    %589 = arith.shrsi %587, %588 : vector<1x2xi32>
    %c0_i32_111 = arith.constant 0 : i32
    %590 = vector.broadcast %c0_i32_111 : i32 to vector<1x2xi32>
    %591 = arith.andi %587, %590 : vector<1x2xi32>
    %592 = tpu.iota {dimensions = array<i32: 0>} : vector<4x2xi32>
    %593 = tpu.iota {dimensions = array<i32: 0>} : vector<4x1xi32>
    %c6 = arith.constant 6 : index
    %c0_112 = arith.constant 0 : index
    %594 = vector.load %arg2[%c6, %c0_112] : memref<8x16xi32, #tpu.memory_space<vmem>>, vector<1x2xi32>
    %c8_i32_113 = arith.constant 8 : i32
    %595 = vector.broadcast %c8_i32_113 : i32 to vector<1x2xi32>
    %596 = arith.muli %595, %591 : vector<1x2xi32>
    %c0_i32_114 = arith.constant 0 : i32
    %597 = vector.broadcast %c0_i32_114 : i32 to vector<1x2xi32>
    %598 = arith.addi %596, %597 : vector<1x2xi32>
    %599 = arith.addi %598, %594 : vector<1x2xi32>
    %c1_i32_115 = arith.constant 1 : i32
    %600 = vector.broadcast %c1_i32_115 : i32 to vector<1x2xi32>
    %601 = arith.andi %599, %600 : vector<1x2xi32>
    %c1_i32_116 = arith.constant 1 : i32
    %602 = vector.broadcast %c1_i32_116 : i32 to vector<1x2xi32>
    %603 = arith.shrsi %599, %602 : vector<1x2xi32>
    %c2_i32_117 = arith.constant 2 : i32
    %604 = vector.broadcast %c2_i32_117 : i32 to vector<1x2xi32>
    %605 = arith.muli %589, %604 : vector<1x2xi32>
    %606 = arith.addi %605, %601 : vector<1x2xi32>
    %607 = vector.broadcast %606 : vector<1x2xi32> to vector<4x2xi32>
    %608 = arith.cmpi eq, %586, %607 : vector<4x2xi32>
    %609 = arith.extui %608 : vector<4x2xi1> to vector<4x2xi32>
    %610 = arith.sitofp %609 : vector<4x2xi32> to vector<4x2xf32>
    %611 = vector.extract_strided_slice %585 {offsets = [0, 0], sizes = [16, 1], strides = [1, 1]} : vector<16x4xf32> to vector<16x1xf32>
    %612 = vector.extract_strided_slice %610 {offsets = [0, 0], sizes = [1, 2], strides = [1, 1]} : vector<4x2xf32> to vector<1x2xf32>
    %613 = vector.broadcast %611 : vector<16x1xf32> to vector<16x2xf32>
    %614 = vector.broadcast %612 : vector<1x2xf32> to vector<16x2xf32>
    %615 = arith.mulf %613, %614 : vector<16x2xf32>
    %616 = vector.extract_strided_slice %585 {offsets = [0, 1], sizes = [16, 1], strides = [1, 1]} : vector<16x4xf32> to vector<16x1xf32>
    %617 = vector.extract_strided_slice %610 {offsets = [1, 0], sizes = [1, 2], strides = [1, 1]} : vector<4x2xf32> to vector<1x2xf32>
    %618 = vector.broadcast %616 : vector<16x1xf32> to vector<16x2xf32>
    %619 = vector.broadcast %617 : vector<1x2xf32> to vector<16x2xf32>
    %620 = arith.mulf %618, %619 : vector<16x2xf32>
    %621 = arith.addf %615, %620 : vector<16x2xf32>
    %622 = vector.extract_strided_slice %585 {offsets = [0, 2], sizes = [16, 1], strides = [1, 1]} : vector<16x4xf32> to vector<16x1xf32>
    %623 = vector.extract_strided_slice %610 {offsets = [2, 0], sizes = [1, 2], strides = [1, 1]} : vector<4x2xf32> to vector<1x2xf32>
    %624 = vector.broadcast %622 : vector<16x1xf32> to vector<16x2xf32>
    %625 = vector.broadcast %623 : vector<1x2xf32> to vector<16x2xf32>
    %626 = arith.mulf %624, %625 : vector<16x2xf32>
    %627 = arith.addf %621, %626 : vector<16x2xf32>
    %628 = vector.extract_strided_slice %585 {offsets = [0, 3], sizes = [16, 1], strides = [1, 1]} : vector<16x4xf32> to vector<16x1xf32>
    %629 = vector.extract_strided_slice %610 {offsets = [3, 0], sizes = [1, 2], strides = [1, 1]} : vector<4x2xf32> to vector<1x2xf32>
    %630 = vector.broadcast %628 : vector<16x1xf32> to vector<16x2xf32>
    %631 = vector.broadcast %629 : vector<1x2xf32> to vector<16x2xf32>
    %632 = arith.mulf %630, %631 : vector<16x2xf32>
    %633 = arith.addf %627, %632 : vector<16x2xf32>
    %634 = vector.broadcast %603 : vector<1x2xi32> to vector<4x2xi32>
    %635 = arith.cmpi eq, %592, %634 : vector<4x2xi32>
    %636 = arith.extui %635 : vector<4x2xi1> to vector<4x2xi32>
    %637 = arith.sitofp %636 : vector<4x2xi32> to vector<4x2xf32>
    %638 = vector.extract_strided_slice %633 {offsets = [0, 0], sizes = [4, 2], strides = [1, 1]} : vector<16x2xf32> to vector<4x2xf32>
    %639 = arith.mulf %638, %637 : vector<4x2xf32>
    %cst_118 = arith.constant dense<0.000000e+00> : vector<2xf32>
    %640 = vector.multi_reduction <add>, %639, %cst_118 [0] : vector<4x2xf32> to vector<2xf32>
    %641 = vector.shape_cast %640 : vector<2xf32> to vector<1x2xf32>
    %c0_i32_119 = arith.constant 0 : i32
    %642 = vector.broadcast %c0_i32_119 : i32 to vector<4x1xi32>
    %643 = arith.cmpi eq, %593, %642 : vector<4x1xi32>
    %644 = arith.extui %643 : vector<4x1xi1> to vector<4x1xi32>
    %645 = arith.sitofp %644 : vector<4x1xi32> to vector<4x1xf32>
    %646 = vector.broadcast %645 : vector<4x1xf32> to vector<4x2xf32>
    %647 = vector.broadcast %641 : vector<1x2xf32> to vector<4x2xf32>
    %648 = arith.mulf %646, %647 : vector<4x2xf32>
    %649 = vector.extract_strided_slice %633 {offsets = [4, 0], sizes = [4, 2], strides = [1, 1]} : vector<16x2xf32> to vector<4x2xf32>
    %650 = arith.mulf %649, %637 : vector<4x2xf32>
    %cst_120 = arith.constant dense<0.000000e+00> : vector<2xf32>
    %651 = vector.multi_reduction <add>, %650, %cst_120 [0] : vector<4x2xf32> to vector<2xf32>
    %652 = vector.shape_cast %651 : vector<2xf32> to vector<1x2xf32>
    %c1_i32_121 = arith.constant 1 : i32
    %653 = vector.broadcast %c1_i32_121 : i32 to vector<4x1xi32>
    %654 = arith.cmpi eq, %593, %653 : vector<4x1xi32>
    %655 = arith.extui %654 : vector<4x1xi1> to vector<4x1xi32>
    %656 = arith.sitofp %655 : vector<4x1xi32> to vector<4x1xf32>
    %657 = vector.broadcast %656 : vector<4x1xf32> to vector<4x2xf32>
    %658 = vector.broadcast %652 : vector<1x2xf32> to vector<4x2xf32>
    %659 = arith.mulf %657, %658 : vector<4x2xf32>
    %660 = arith.addf %648, %659 : vector<4x2xf32>
    %661 = vector.extract_strided_slice %633 {offsets = [8, 0], sizes = [4, 2], strides = [1, 1]} : vector<16x2xf32> to vector<4x2xf32>
    %662 = arith.mulf %661, %637 : vector<4x2xf32>
    %cst_122 = arith.constant dense<0.000000e+00> : vector<2xf32>
    %663 = vector.multi_reduction <add>, %662, %cst_122 [0] : vector<4x2xf32> to vector<2xf32>
    %664 = vector.shape_cast %663 : vector<2xf32> to vector<1x2xf32>
    %c2_i32_123 = arith.constant 2 : i32
    %665 = vector.broadcast %c2_i32_123 : i32 to vector<4x1xi32>
    %666 = arith.cmpi eq, %593, %665 : vector<4x1xi32>
    %667 = arith.extui %666 : vector<4x1xi1> to vector<4x1xi32>
    %668 = arith.sitofp %667 : vector<4x1xi32> to vector<4x1xf32>
    %669 = vector.broadcast %668 : vector<4x1xf32> to vector<4x2xf32>
    %670 = vector.broadcast %664 : vector<1x2xf32> to vector<4x2xf32>
    %671 = arith.mulf %669, %670 : vector<4x2xf32>
    %672 = arith.addf %660, %671 : vector<4x2xf32>
    %673 = vector.extract_strided_slice %633 {offsets = [12, 0], sizes = [4, 2], strides = [1, 1]} : vector<16x2xf32> to vector<4x2xf32>
    %674 = arith.mulf %673, %637 : vector<4x2xf32>
    %cst_124 = arith.constant dense<0.000000e+00> : vector<2xf32>
    %675 = vector.multi_reduction <add>, %674, %cst_124 [0] : vector<4x2xf32> to vector<2xf32>
    %676 = vector.shape_cast %675 : vector<2xf32> to vector<1x2xf32>
    %c3_i32_125 = arith.constant 3 : i32
    %677 = vector.broadcast %c3_i32_125 : i32 to vector<4x1xi32>
    %678 = arith.cmpi eq, %593, %677 : vector<4x1xi32>
    %679 = arith.extui %678 : vector<4x1xi1> to vector<4x1xi32>
    %680 = arith.sitofp %679 : vector<4x1xi32> to vector<4x1xf32>
    %681 = vector.broadcast %680 : vector<4x1xf32> to vector<4x2xf32>
    %682 = vector.broadcast %676 : vector<1x2xf32> to vector<4x2xf32>
    %683 = arith.mulf %681, %682 : vector<4x2xf32>
    %684 = arith.addf %672, %683 : vector<4x2xf32>
    %c7 = arith.constant 7 : index
    %c0_126 = arith.constant 0 : index
    %685 = vector.load %arg2[%c7, %c0_126] : memref<8x16xi32, #tpu.memory_space<vmem>>, vector<1x2xi32>
    %c8_i32_127 = arith.constant 8 : i32
    %686 = vector.broadcast %c8_i32_127 : i32 to vector<1x2xi32>
    %687 = arith.muli %686, %591 : vector<1x2xi32>
    %c4_i32_128 = arith.constant 4 : i32
    %688 = vector.broadcast %c4_i32_128 : i32 to vector<1x2xi32>
    %689 = arith.addi %687, %688 : vector<1x2xi32>
    %690 = arith.addi %689, %685 : vector<1x2xi32>
    %c1_i32_129 = arith.constant 1 : i32
    %691 = vector.broadcast %c1_i32_129 : i32 to vector<1x2xi32>
    %692 = arith.andi %690, %691 : vector<1x2xi32>
    %c1_i32_130 = arith.constant 1 : i32
    %693 = vector.broadcast %c1_i32_130 : i32 to vector<1x2xi32>
    %694 = arith.shrsi %690, %693 : vector<1x2xi32>
    %c2_i32_131 = arith.constant 2 : i32
    %695 = vector.broadcast %c2_i32_131 : i32 to vector<1x2xi32>
    %696 = arith.muli %589, %695 : vector<1x2xi32>
    %697 = arith.addi %696, %692 : vector<1x2xi32>
    %698 = vector.broadcast %697 : vector<1x2xi32> to vector<4x2xi32>
    %699 = arith.cmpi eq, %586, %698 : vector<4x2xi32>
    %700 = arith.extui %699 : vector<4x2xi1> to vector<4x2xi32>
    %701 = arith.sitofp %700 : vector<4x2xi32> to vector<4x2xf32>
    %702 = vector.extract_strided_slice %585 {offsets = [0, 0], sizes = [16, 1], strides = [1, 1]} : vector<16x4xf32> to vector<16x1xf32>
    %703 = vector.extract_strided_slice %701 {offsets = [0, 0], sizes = [1, 2], strides = [1, 1]} : vector<4x2xf32> to vector<1x2xf32>
    %704 = vector.broadcast %702 : vector<16x1xf32> to vector<16x2xf32>
    %705 = vector.broadcast %703 : vector<1x2xf32> to vector<16x2xf32>
    %706 = arith.mulf %704, %705 : vector<16x2xf32>
    %707 = vector.extract_strided_slice %585 {offsets = [0, 1], sizes = [16, 1], strides = [1, 1]} : vector<16x4xf32> to vector<16x1xf32>
    %708 = vector.extract_strided_slice %701 {offsets = [1, 0], sizes = [1, 2], strides = [1, 1]} : vector<4x2xf32> to vector<1x2xf32>
    %709 = vector.broadcast %707 : vector<16x1xf32> to vector<16x2xf32>
    %710 = vector.broadcast %708 : vector<1x2xf32> to vector<16x2xf32>
    %711 = arith.mulf %709, %710 : vector<16x2xf32>
    %712 = arith.addf %706, %711 : vector<16x2xf32>
    %713 = vector.extract_strided_slice %585 {offsets = [0, 2], sizes = [16, 1], strides = [1, 1]} : vector<16x4xf32> to vector<16x1xf32>
    %714 = vector.extract_strided_slice %701 {offsets = [2, 0], sizes = [1, 2], strides = [1, 1]} : vector<4x2xf32> to vector<1x2xf32>
    %715 = vector.broadcast %713 : vector<16x1xf32> to vector<16x2xf32>
    %716 = vector.broadcast %714 : vector<1x2xf32> to vector<16x2xf32>
    %717 = arith.mulf %715, %716 : vector<16x2xf32>
    %718 = arith.addf %712, %717 : vector<16x2xf32>
    %719 = vector.extract_strided_slice %585 {offsets = [0, 3], sizes = [16, 1], strides = [1, 1]} : vector<16x4xf32> to vector<16x1xf32>
    %720 = vector.extract_strided_slice %701 {offsets = [3, 0], sizes = [1, 2], strides = [1, 1]} : vector<4x2xf32> to vector<1x2xf32>
    %721 = vector.broadcast %719 : vector<16x1xf32> to vector<16x2xf32>
    %722 = vector.broadcast %720 : vector<1x2xf32> to vector<16x2xf32>
    %723 = arith.mulf %721, %722 : vector<16x2xf32>
    %724 = arith.addf %718, %723 : vector<16x2xf32>
    %725 = vector.broadcast %694 : vector<1x2xi32> to vector<4x2xi32>
    %726 = arith.cmpi eq, %592, %725 : vector<4x2xi32>
    %727 = arith.extui %726 : vector<4x2xi1> to vector<4x2xi32>
    %728 = arith.sitofp %727 : vector<4x2xi32> to vector<4x2xf32>
    %729 = vector.extract_strided_slice %724 {offsets = [0, 0], sizes = [4, 2], strides = [1, 1]} : vector<16x2xf32> to vector<4x2xf32>
    %730 = arith.mulf %729, %728 : vector<4x2xf32>
    %cst_132 = arith.constant dense<0.000000e+00> : vector<2xf32>
    %731 = vector.multi_reduction <add>, %730, %cst_132 [0] : vector<4x2xf32> to vector<2xf32>
    %732 = vector.shape_cast %731 : vector<2xf32> to vector<1x2xf32>
    %c0_i32_133 = arith.constant 0 : i32
    %733 = vector.broadcast %c0_i32_133 : i32 to vector<4x1xi32>
    %734 = arith.cmpi eq, %593, %733 : vector<4x1xi32>
    %735 = arith.extui %734 : vector<4x1xi1> to vector<4x1xi32>
    %736 = arith.sitofp %735 : vector<4x1xi32> to vector<4x1xf32>
    %737 = vector.broadcast %736 : vector<4x1xf32> to vector<4x2xf32>
    %738 = vector.broadcast %732 : vector<1x2xf32> to vector<4x2xf32>
    %739 = arith.mulf %737, %738 : vector<4x2xf32>
    %740 = vector.extract_strided_slice %724 {offsets = [4, 0], sizes = [4, 2], strides = [1, 1]} : vector<16x2xf32> to vector<4x2xf32>
    %741 = arith.mulf %740, %728 : vector<4x2xf32>
    %cst_134 = arith.constant dense<0.000000e+00> : vector<2xf32>
    %742 = vector.multi_reduction <add>, %741, %cst_134 [0] : vector<4x2xf32> to vector<2xf32>
    %743 = vector.shape_cast %742 : vector<2xf32> to vector<1x2xf32>
    %c1_i32_135 = arith.constant 1 : i32
    %744 = vector.broadcast %c1_i32_135 : i32 to vector<4x1xi32>
    %745 = arith.cmpi eq, %593, %744 : vector<4x1xi32>
    %746 = arith.extui %745 : vector<4x1xi1> to vector<4x1xi32>
    %747 = arith.sitofp %746 : vector<4x1xi32> to vector<4x1xf32>
    %748 = vector.broadcast %747 : vector<4x1xf32> to vector<4x2xf32>
    %749 = vector.broadcast %743 : vector<1x2xf32> to vector<4x2xf32>
    %750 = arith.mulf %748, %749 : vector<4x2xf32>
    %751 = arith.addf %739, %750 : vector<4x2xf32>
    %752 = vector.extract_strided_slice %724 {offsets = [8, 0], sizes = [4, 2], strides = [1, 1]} : vector<16x2xf32> to vector<4x2xf32>
    %753 = arith.mulf %752, %728 : vector<4x2xf32>
    %cst_136 = arith.constant dense<0.000000e+00> : vector<2xf32>
    %754 = vector.multi_reduction <add>, %753, %cst_136 [0] : vector<4x2xf32> to vector<2xf32>
    %755 = vector.shape_cast %754 : vector<2xf32> to vector<1x2xf32>
    %c2_i32_137 = arith.constant 2 : i32
    %756 = vector.broadcast %c2_i32_137 : i32 to vector<4x1xi32>
    %757 = arith.cmpi eq, %593, %756 : vector<4x1xi32>
    %758 = arith.extui %757 : vector<4x1xi1> to vector<4x1xi32>
    %759 = arith.sitofp %758 : vector<4x1xi32> to vector<4x1xf32>
    %760 = vector.broadcast %759 : vector<4x1xf32> to vector<4x2xf32>
    %761 = vector.broadcast %755 : vector<1x2xf32> to vector<4x2xf32>
    %762 = arith.mulf %760, %761 : vector<4x2xf32>
    %763 = arith.addf %751, %762 : vector<4x2xf32>
    %764 = vector.extract_strided_slice %724 {offsets = [12, 0], sizes = [4, 2], strides = [1, 1]} : vector<16x2xf32> to vector<4x2xf32>
    %765 = arith.mulf %764, %728 : vector<4x2xf32>
    %cst_138 = arith.constant dense<0.000000e+00> : vector<2xf32>
    %766 = vector.multi_reduction <add>, %765, %cst_138 [0] : vector<4x2xf32> to vector<2xf32>
    %767 = vector.shape_cast %766 : vector<2xf32> to vector<1x2xf32>
    %c3_i32_139 = arith.constant 3 : i32
    %768 = vector.broadcast %c3_i32_139 : i32 to vector<4x1xi32>
    %769 = arith.cmpi eq, %593, %768 : vector<4x1xi32>
    %770 = arith.extui %769 : vector<4x1xi1> to vector<4x1xi32>
    %771 = arith.sitofp %770 : vector<4x1xi32> to vector<4x1xf32>
    %772 = vector.broadcast %771 : vector<4x1xf32> to vector<4x2xf32>
    %773 = vector.broadcast %767 : vector<1x2xf32> to vector<4x2xf32>
    %774 = arith.mulf %772, %773 : vector<4x2xf32>
    %775 = arith.addf %763, %774 : vector<4x2xf32>
    %c36 = arith.constant 36 : index
    %c0_140 = arith.constant 0 : index
    %776 = vector.load %arg1[%c36, %c0_140] : memref<45x16xf32, #tpu.memory_space<vmem>>, vector<8x16xf32>
    %c44 = arith.constant 44 : index
    %c0_141 = arith.constant 0 : index
    %777 = vector.load %arg1[%c44, %c0_141] : memref<45x16xf32, #tpu.memory_space<vmem>>, vector<1x16xf32>
    %778 = tpu.iota {dimensions = array<i32: 0>} : vector<2x1xi32>
    %cst_142 = arith.constant 0.000000e+00 : f32
    %779 = vector.broadcast %cst_142 : f32 to vector<2x16xf32>
    %780 = vector.broadcast %777 : vector<1x16xf32> to vector<2x16xf32>
    %781 = arith.addf %779, %780 : vector<2x16xf32>
    %782 = vector.extract_strided_slice %684 {offsets = [0, 0], sizes = [1, 1], strides = [1, 1]} : vector<4x2xf32> to vector<1x1xf32>
    %783 = vector.extract_strided_slice %776 {offsets = [0, 0], sizes = [1, 16], strides = [1, 1]} : vector<8x16xf32> to vector<1x16xf32>
    %784 = vector.broadcast %782 : vector<1x1xf32> to vector<1x16xf32>
    %785 = arith.mulf %784, %783 : vector<1x16xf32>
    %786 = vector.extract_strided_slice %684 {offsets = [1, 0], sizes = [1, 1], strides = [1, 1]} : vector<4x2xf32> to vector<1x1xf32>
    %787 = vector.extract_strided_slice %776 {offsets = [1, 0], sizes = [1, 16], strides = [1, 1]} : vector<8x16xf32> to vector<1x16xf32>
    %788 = vector.broadcast %786 : vector<1x1xf32> to vector<1x16xf32>
    %789 = arith.mulf %788, %787 : vector<1x16xf32>
    %790 = arith.addf %785, %789 : vector<1x16xf32>
    %791 = vector.extract_strided_slice %684 {offsets = [2, 0], sizes = [1, 1], strides = [1, 1]} : vector<4x2xf32> to vector<1x1xf32>
    %792 = vector.extract_strided_slice %776 {offsets = [2, 0], sizes = [1, 16], strides = [1, 1]} : vector<8x16xf32> to vector<1x16xf32>
    %793 = vector.broadcast %791 : vector<1x1xf32> to vector<1x16xf32>
    %794 = arith.mulf %793, %792 : vector<1x16xf32>
    %795 = arith.addf %790, %794 : vector<1x16xf32>
    %796 = vector.extract_strided_slice %684 {offsets = [3, 0], sizes = [1, 1], strides = [1, 1]} : vector<4x2xf32> to vector<1x1xf32>
    %797 = vector.extract_strided_slice %776 {offsets = [3, 0], sizes = [1, 16], strides = [1, 1]} : vector<8x16xf32> to vector<1x16xf32>
    %798 = vector.broadcast %796 : vector<1x1xf32> to vector<1x16xf32>
    %799 = arith.mulf %798, %797 : vector<1x16xf32>
    %800 = arith.addf %795, %799 : vector<1x16xf32>
    %801 = vector.extract_strided_slice %775 {offsets = [0, 0], sizes = [1, 1], strides = [1, 1]} : vector<4x2xf32> to vector<1x1xf32>
    %802 = vector.extract_strided_slice %776 {offsets = [4, 0], sizes = [1, 16], strides = [1, 1]} : vector<8x16xf32> to vector<1x16xf32>
    %803 = vector.broadcast %801 : vector<1x1xf32> to vector<1x16xf32>
    %804 = arith.mulf %803, %802 : vector<1x16xf32>
    %805 = arith.addf %800, %804 : vector<1x16xf32>
    %806 = vector.extract_strided_slice %775 {offsets = [1, 0], sizes = [1, 1], strides = [1, 1]} : vector<4x2xf32> to vector<1x1xf32>
    %807 = vector.extract_strided_slice %776 {offsets = [5, 0], sizes = [1, 16], strides = [1, 1]} : vector<8x16xf32> to vector<1x16xf32>
    %808 = vector.broadcast %806 : vector<1x1xf32> to vector<1x16xf32>
    %809 = arith.mulf %808, %807 : vector<1x16xf32>
    %810 = arith.addf %805, %809 : vector<1x16xf32>
    %811 = vector.extract_strided_slice %775 {offsets = [2, 0], sizes = [1, 1], strides = [1, 1]} : vector<4x2xf32> to vector<1x1xf32>
    %812 = vector.extract_strided_slice %776 {offsets = [6, 0], sizes = [1, 16], strides = [1, 1]} : vector<8x16xf32> to vector<1x16xf32>
    %813 = vector.broadcast %811 : vector<1x1xf32> to vector<1x16xf32>
    %814 = arith.mulf %813, %812 : vector<1x16xf32>
    %815 = arith.addf %810, %814 : vector<1x16xf32>
    %816 = vector.extract_strided_slice %775 {offsets = [3, 0], sizes = [1, 1], strides = [1, 1]} : vector<4x2xf32> to vector<1x1xf32>
    %817 = vector.extract_strided_slice %776 {offsets = [7, 0], sizes = [1, 16], strides = [1, 1]} : vector<8x16xf32> to vector<1x16xf32>
    %818 = vector.broadcast %816 : vector<1x1xf32> to vector<1x16xf32>
    %819 = arith.mulf %818, %817 : vector<1x16xf32>
    %820 = arith.addf %815, %819 : vector<1x16xf32>
    %c0_i32_143 = arith.constant 0 : i32
    %821 = vector.broadcast %c0_i32_143 : i32 to vector<2x1xi32>
    %822 = arith.cmpi eq, %778, %821 : vector<2x1xi32>
    %823 = arith.extui %822 : vector<2x1xi1> to vector<2x1xi32>
    %824 = arith.sitofp %823 : vector<2x1xi32> to vector<2x1xf32>
    %825 = vector.broadcast %824 : vector<2x1xf32> to vector<2x16xf32>
    %826 = vector.broadcast %820 : vector<1x16xf32> to vector<2x16xf32>
    %827 = arith.mulf %825, %826 : vector<2x16xf32>
    %828 = arith.addf %781, %827 : vector<2x16xf32>
    %829 = vector.extract_strided_slice %684 {offsets = [0, 1], sizes = [1, 1], strides = [1, 1]} : vector<4x2xf32> to vector<1x1xf32>
    %830 = vector.extract_strided_slice %776 {offsets = [0, 0], sizes = [1, 16], strides = [1, 1]} : vector<8x16xf32> to vector<1x16xf32>
    %831 = vector.broadcast %829 : vector<1x1xf32> to vector<1x16xf32>
    %832 = arith.mulf %831, %830 : vector<1x16xf32>
    %833 = vector.extract_strided_slice %684 {offsets = [1, 1], sizes = [1, 1], strides = [1, 1]} : vector<4x2xf32> to vector<1x1xf32>
    %834 = vector.extract_strided_slice %776 {offsets = [1, 0], sizes = [1, 16], strides = [1, 1]} : vector<8x16xf32> to vector<1x16xf32>
    %835 = vector.broadcast %833 : vector<1x1xf32> to vector<1x16xf32>
    %836 = arith.mulf %835, %834 : vector<1x16xf32>
    %837 = arith.addf %832, %836 : vector<1x16xf32>
    %838 = vector.extract_strided_slice %684 {offsets = [2, 1], sizes = [1, 1], strides = [1, 1]} : vector<4x2xf32> to vector<1x1xf32>
    %839 = vector.extract_strided_slice %776 {offsets = [2, 0], sizes = [1, 16], strides = [1, 1]} : vector<8x16xf32> to vector<1x16xf32>
    %840 = vector.broadcast %838 : vector<1x1xf32> to vector<1x16xf32>
    %841 = arith.mulf %840, %839 : vector<1x16xf32>
    %842 = arith.addf %837, %841 : vector<1x16xf32>
    %843 = vector.extract_strided_slice %684 {offsets = [3, 1], sizes = [1, 1], strides = [1, 1]} : vector<4x2xf32> to vector<1x1xf32>
    %844 = vector.extract_strided_slice %776 {offsets = [3, 0], sizes = [1, 16], strides = [1, 1]} : vector<8x16xf32> to vector<1x16xf32>
    %845 = vector.broadcast %843 : vector<1x1xf32> to vector<1x16xf32>
    %846 = arith.mulf %845, %844 : vector<1x16xf32>
    %847 = arith.addf %842, %846 : vector<1x16xf32>
    %848 = vector.extract_strided_slice %775 {offsets = [0, 1], sizes = [1, 1], strides = [1, 1]} : vector<4x2xf32> to vector<1x1xf32>
    %849 = vector.extract_strided_slice %776 {offsets = [4, 0], sizes = [1, 16], strides = [1, 1]} : vector<8x16xf32> to vector<1x16xf32>
    %850 = vector.broadcast %848 : vector<1x1xf32> to vector<1x16xf32>
    %851 = arith.mulf %850, %849 : vector<1x16xf32>
    %852 = arith.addf %847, %851 : vector<1x16xf32>
    %853 = vector.extract_strided_slice %775 {offsets = [1, 1], sizes = [1, 1], strides = [1, 1]} : vector<4x2xf32> to vector<1x1xf32>
    %854 = vector.extract_strided_slice %776 {offsets = [5, 0], sizes = [1, 16], strides = [1, 1]} : vector<8x16xf32> to vector<1x16xf32>
    %855 = vector.broadcast %853 : vector<1x1xf32> to vector<1x16xf32>
    %856 = arith.mulf %855, %854 : vector<1x16xf32>
    %857 = arith.addf %852, %856 : vector<1x16xf32>
    %858 = vector.extract_strided_slice %775 {offsets = [2, 1], sizes = [1, 1], strides = [1, 1]} : vector<4x2xf32> to vector<1x1xf32>
    %859 = vector.extract_strided_slice %776 {offsets = [6, 0], sizes = [1, 16], strides = [1, 1]} : vector<8x16xf32> to vector<1x16xf32>
    %860 = vector.broadcast %858 : vector<1x1xf32> to vector<1x16xf32>
    %861 = arith.mulf %860, %859 : vector<1x16xf32>
    %862 = arith.addf %857, %861 : vector<1x16xf32>
    %863 = vector.extract_strided_slice %775 {offsets = [3, 1], sizes = [1, 1], strides = [1, 1]} : vector<4x2xf32> to vector<1x1xf32>
    %864 = vector.extract_strided_slice %776 {offsets = [7, 0], sizes = [1, 16], strides = [1, 1]} : vector<8x16xf32> to vector<1x16xf32>
    %865 = vector.broadcast %863 : vector<1x1xf32> to vector<1x16xf32>
    %866 = arith.mulf %865, %864 : vector<1x16xf32>
    %867 = arith.addf %862, %866 : vector<1x16xf32>
    %c1_i32_144 = arith.constant 1 : i32
    %868 = vector.broadcast %c1_i32_144 : i32 to vector<2x1xi32>
    %869 = arith.cmpi eq, %778, %868 : vector<2x1xi32>
    %870 = arith.extui %869 : vector<2x1xi1> to vector<2x1xi32>
    %871 = arith.sitofp %870 : vector<2x1xi32> to vector<2x1xf32>
    %872 = vector.broadcast %871 : vector<2x1xf32> to vector<2x16xf32>
    %873 = vector.broadcast %867 : vector<1x16xf32> to vector<2x16xf32>
    %874 = arith.mulf %872, %873 : vector<2x16xf32>
    %875 = arith.addf %828, %874 : vector<2x16xf32>
    %c0_145 = arith.constant 0 : index
    %c0_146 = arith.constant 0 : index
    %876 = vector.load %arg3[%c0_145, %c0_146] : memref<2x16xf32, #tpu.memory_space<vmem>>, vector<2x16xf32>
    tpu.vector_store %arg3[%c0_145, %c0_146], %875 {strides = array<i32>} : memref<2x16xf32, #tpu.memory_space<vmem>>, vector<2x16xf32>,
    return
  }
}

</mosaic_0001>

<llo_original>
// kernel: kdnet_forward.1
$region0: #{kdnet_forward.1}
  #allocation0 [shape = 'u32[]', space=smem, size = 0x4, offset = 0x4, fixed_abs, tag = 'smem constant byte address 0x4 - core index']
  #allocation1 [shape = 'u32[144,128]{1,0:T(1,128)}', space=vmem, size = 0x12000, scoped, tag = 'internal scratch']
  %s0 = inlined_call_operand.vmem [shape: f32[2,4,16], index: 0, kind: input, shape index: {}]
  %s1 = inlined_call_operand.vmem [shape: f32[45,16], index: 1, kind: input, shape index: {}]
  %s2 = inlined_call_operand.vmem [shape: s32[8,16], index: 2, kind: input, shape index: {}]
  %s3 = inlined_call_operand.hbm [shape: f32[2,16], index: 3, kind: output, shape index: {}]
  %s4 = sld [smem:[#allocation0]]
  $region22: #{kdnet_forward.1} parent=0
    _
  %s6 = ssub.s32 1, %s4
  %s7 = scalar_select 0, %s6, %s4
  $region1: #{kdnet_forward.1} parent=0
    #allocation2 [shape = 'u8[1024]{0}', space=vmem, size = 0x400, scoped, tag = 'output window, operand 0, single buffered']
    #allocation3 [shape = 's32[1]{0}', space=sflag, size = 0x4, scoped, tag = 'scoped memory for kdnet_forward.1']
    %8 = vsyncpa [#allocation3], 0
    // Predicated region
    $region2: #{kdnet_forward.1} parent=1 // pred_check
      _
    $region3: #{kdnet_forward.1} parent=1 // pred_check_branch
      %10 = sbr.rel (0) target = $region5
    $region4: #{kdnet_forward.1} parent=1 // pred_region
      _
    $region5: #{kdnet_forward.1} parent=1 // pred_fallthru
      _
    // Predicated region
    $region6: #{kdnet_forward.1} parent=1 // pred_check
      _
    $region7: #{kdnet_forward.1} parent=1 // pred_check_branch
      %12 = sbr.rel (0) target = $region9
    $region8: #{kdnet_forward.1} parent=1 // pred_region
      _
    $region9: #{kdnet_forward.1} parent=1 // pred_fallthru
      _
    // Predicated region
    $region10: #{kdnet_forward.1} parent=1 // pred_check
      _
    $region11: #{kdnet_forward.1} parent=1 // pred_check_branch
      %14 = sbr.rel (0) target = $region13
    $region12: #{kdnet_forward.1} parent=1 // pred_region
      _
    $region13: #{kdnet_forward.1} parent=1 // pred_fallthru
      _
    %v15 = vlaneseq
    %v16 = vand.u32 %v15, 127
    %v17 = vlaneseq
    %v18 = vshrl.u32 %v17, 7
    %v19 = vadd.s32 %v18, 8
    %vm20 = vcmp.eq.s32.totalorder %v16, %v18
    %vm21 = vcmp.eq.s32.totalorder %v16, %v19
    %v22 = vsel %vm20, 1, 0
    %v23 = vsel %vm21, 1, 0
    %v24 = vcvt.s32.f32 %v22
    %v25 = vcvt.s32.f32 %v23
    %v26 = vld [vmem:[%s0] sm:$0xf]
    %v27 = vadd.s32 %v18, 16
    %v28 = vadd.s32 %v19, 16
    %vm29 = vcmp.eq.s32.totalorder %v16, %v27
    %vm30 = vcmp.eq.s32.totalorder %v16, %v28
    %v31 = vsel %vm29, 1, 0
    %v32 = vsel %vm30, 1, 0
    %v33 = vcvt.s32.f32 %v31
    %v34 = vcvt.s32.f32 %v32
    %s35 = scalar_lea.vmem %s0, 4
    %v36 = vld [vmem:[%s35] sm:$0xf]
    %vm37 = vcmask 130048
    %v39 = vsel %vm37, %v36, 0
    %41 = vmatprep.subr.mxu0 0.0
    %42 = vmatpush1.msra.mxu0 0.0
    %43 = vmatprep.subr.mxu0 0.0
    %44 = vmatpush1.msra.mxu0 0.0
    %45 = vmatprep.subr.mxu0 0.0
    %46 = vmatpush1.msra.mxu0 0.0
    %47 = vmatprep.subr.mxu0 0.0
    %48 = vmatpush1.msra.mxu0 0.0
    %49 = vmatprep.subr.mxu0 0.0
    %50 = vmatpush1.msra.mxu0 0.0
    %51 = vmatprep.subr.mxu0 0.0
    %52 = vmatpush1.msra.mxu0 0.0
    %53 = vmatprep.subr.mxu0 0.0
    %54 = vmatpush1.msra.mxu0 0.0
    %55 = vmatprep.subr.mxu0 0.0
    %56 = vmatpush1.msra.mxu0 0.0
    %57 = vmatprep.subr.mxu0 0.0
    %58 = vmatpush1.msra.mxu0 0.0
    %59 = vmatprep.subr.mxu0 0.0
    %60 = vmatpush1.msra.mxu0 0.0
    %61 = vmatprep.subr.mxu0 0.0
    %62 = vmatpush1.msra.mxu0 0.0
    %63 = vmatprep.subr.mxu0 0.0
    %64 = vmatpush1.msra.mxu0 0.0
    %65 = vmatprep.subr.mxu0 0.0
    %66 = vmatpush1.msra.mxu0 0.0
    %67 = vmatprep.subr.mxu0 0.0
    %68 = vmatpush1.msra.mxu0 0.0
    %69 = vmatprep.subr.mxu0 0.0
    %70 = vmatpush1.msra.mxu0 %v34
    %71 = vmatprep.subr.mxu0 0.0
    %72 = vmatpush1.msra.mxu0 %v33
    %73 = vmatprep.subr.mxu0 0.0
    %74 = vmatpush2.msra.mxu0 0.0
    %75 = vmatprep.subr.mxu0 0.0
    %76 = vmatpush2.msra.mxu0 0.0
    %77 = vmatprep.subr.mxu0 0.0
    %78 = vmatpush2.msra.mxu0 0.0
    %79 = vmatprep.subr.mxu0 0.0
    %80 = vmatpush2.msra.mxu0 0.0
    %81 = vmatprep.subr.mxu0 0.0
    %82 = vmatpush2.msra.mxu0 0.0
    %83 = vmatprep.subr.mxu0 0.0
    %84 = vmatpush2.msra.mxu0 0.0
    %85 = vmatprep.subr.mxu0 0.0
    %86 = vmatpush2.msra.mxu0 0.0
    %87 = vmatprep.subr.mxu0 0.0
    %88 = vmatpush2.msra.mxu0 0.0
    %89 = vmatprep.subr.mxu0 0.0
    %90 = vmatpush2.msra.mxu0 0.0
    %91 = vmatprep.subr.mxu0 0.0
    %92 = vmatpush2.msra.mxu0 0.0
    %93 = vmatprep.subr.mxu0 0.0
    %94 = vmatpush2.msra.mxu0 0.0
    %95 = vmatprep.subr.mxu0 0.0
    %96 = vmatpush2.msra.mxu0 0.0
    %97 = vmatprep.subr.mxu0 0.0
    %98 = vmatpush2.msra.mxu0 0.0
    %99 = vmatprep.subr.mxu0 0.0
    %100 = vmatpush2.msra.mxu0 0.0
    %101 = vmatprep.subr.mxu0 0.0
    %102 = vmatpush2.msra.mxu0 0.0
    %103 = vmatprep.subr.mxu0 0.0
    %104 = vmatpush2.msra.mxu0 0.0
    %105 = vmatprep.mubr.f32.mxu0 0.0
    %106 = vmatmul.mubr.f32.gmra.mxu0 %v39
    %v107 = vpop.f32.mrf.mxu0
    %v108 = vadd.f32 0.0, %v107
    %v109 = vpop.f32.mrf.mxu0
    %110 = vdwg.mxu0
    %v112 = vsel %vm37, %v26, 0
    %114 = vmatprep.subr.mxu0 0.0
    %115 = vmatpush1.msra.mxu0 0.0
    %116 = vmatprep.subr.mxu0 0.0
    %117 = vmatpush1.msra.mxu0 0.0
    %118 = vmatprep.subr.mxu0 0.0
    %119 = vmatpush1.msra.mxu0 0.0
    %120 = vmatprep.subr.mxu0 0.0
    %121 = vmatpush1.msra.mxu0 0.0
    %122 = vmatprep.subr.mxu0 0.0
    %123 = vmatpush1.msra.mxu0 0.0
    %124 = vmatprep.subr.mxu0 0.0
    %125 = vmatpush1.msra.mxu0 0.0
    %126 = vmatprep.subr.mxu0 0.0
    %127 = vmatpush1.msra.mxu0 0.0
    %128 = vmatprep.subr.mxu0 0.0
    %129 = vmatpush1.msra.mxu0 0.0
    %130 = vmatprep.subr.mxu0 0.0
    %131 = vmatpush1.msra.mxu0 0.0
    %132 = vmatprep.subr.mxu0 0.0
    %133 = vmatpush1.msra.mxu0 0.0
    %134 = vmatprep.subr.mxu0 0.0
    %135 = vmatpush1.msra.mxu0 0.0
    %136 = vmatprep.subr.mxu0 0.0
    %137 = vmatpush1.msra.mxu0 0.0
    %138 = vmatprep.subr.mxu0 0.0
    %139 = vmatpush1.msra.mxu0 0.0
    %140 = vmatprep.subr.mxu0 0.0
    %141 = vmatpush1.msra.mxu0 0.0
    %142 = vmatprep.subr.mxu0 0.0
    %143 = vmatpush1.msra.mxu0 %v25
    %144 = vmatprep.subr.mxu0 0.0
    %145 = vmatpush1.msra.mxu0 %v24
    %146 = vmatprep.subr.mxu0 0.0
    %147 = vmatpush2.msra.mxu0 0.0
    %148 = vmatprep.subr.mxu0 0.0
    %149 = vmatpush2.msra.mxu0 0.0
    %150 = vmatprep.subr.mxu0 0.0
    %151 = vmatpush2.msra.mxu0 0.0
    %152 = vmatprep.subr.mxu0 0.0
    %153 = vmatpush2.msra.mxu0 0.0
    %154 = vmatprep.subr.mxu0 0.0
    %155 = vmatpush2.msra.mxu0 0.0
    %156 = vmatprep.subr.mxu0 0.0
    %157 = vmatpush2.msra.mxu0 0.0
    %158 = vmatprep.subr.mxu0 0.0
    %159 = vmatpush2.msra.mxu0 0.0
    %160 = vmatprep.subr.mxu0 0.0
    %161 = vmatpush2.msra.mxu0 0.0
    %162 = vmatprep.subr.mxu0 0.0
    %163 = vmatpush2.msra.mxu0 0.0
    %164 = vmatprep.subr.mxu0 0.0
    %165 = vmatpush2.msra.mxu0 0.0
    %166 = vmatprep.subr.mxu0 0.0
    %167 = vmatpush2.msra.mxu0 0.0
    %168 = vmatprep.subr.mxu0 0.0
    %169 = vmatpush2.msra.mxu0 0.0
    %170 = vmatprep.subr.mxu0 0.0
    %171 = vmatpush2.msra.mxu0 0.0
    %172 = vmatprep.subr.mxu0 0.0
    %173 = vmatpush2.msra.mxu0 0.0
    %174 = vmatprep.subr.mxu0 0.0
    %175 = vmatpush2.msra.mxu0 0.0
    %176 = vmatprep.subr.mxu0 0.0
    %177 = vmatpush2.msra.mxu0 0.0
    %178 = vmatprep.mubr.f32.mxu0 0.0
    %179 = vmatmul.mubr.f32.gmra.mxu0 %v112
    %v180 = vpop.f32.mrf.mxu0
    %v181 = vadd.f32 %v108, %v180
    %v182 = vpop.f32.mrf.mxu0
    %183 = vdwg.mxu0
    %v184 = vld [vmem:[%s1] sm:$0xf]
    %186 = vset.pattern.permute.xlu0 0
    %187 = vperm.xlu0 %186, %v184
    %v188 = vpop.permute.xlu0 %187
    %v190 = vlaneseq
    %v191 = vshrl.u32 %v190, 7
    %v192 = vsub.s32 0, %v191
    %v193 = vrot.slane %v181, %v192
    %v194 = vmul.f32 %v188, %v193
    %195 = vset.pattern.permute.xlu0 1
    %196 = vperm.xlu0 %195, %v184
    %v197 = vpop.permute.xlu0 %196
    %v199 = vlaneseq
    %v200 = vshrl.u32 %v199, 7
    %v201 = vsub.s32 1, %v200
    %v202 = vrot.slane %v181, %v201
    %v203 = vmul.f32 %v197, %v202
    %v204 = vadd.f32 %v194, %v203
    %205 = vset.pattern.permute.xlu0 2
    %206 = vperm.xlu0 %205, %v184
    %v207 = vpop.permute.xlu0 %206
    %v209 = vlaneseq
    %v210 = vshrl.u32 %v209, 7
    %v211 = vsub.s32 2, %v210
    %v212 = vrot.slane %v181, %v211
    %v213 = vmul.f32 %v207, %v212
    %v214 = vadd.f32 %v204, %v213
    %215 = vset.pattern.permute.xlu0 3
    %216 = vperm.xlu0 %215, %v184
    %v217 = vpop.permute.xlu0 %216
    %v219 = vlaneseq
    %v220 = vshrl.u32 %v219, 7
    %v221 = vsub.s32 3, %v220
    %v222 = vrot.slane %v181, %v221
    %v223 = vmul.f32 %v217, %v222
    %v224 = vadd.f32 %v214, %v223
    %v225 = vmul.f32 %v224, %v224
    %vm226 = vcmask 257024
    %v227 = vsel %vm226, %v224, 0.0
    %228 = vadd.xlane.f32.xlu0 %v227
    %v229 = vpop.xlane.xlu0 %228
    %v230 = vsel %vm226, %v225, 0.0
    %231 = vadd.xlane.f32.xlu0 %v230
    %v232 = vpop.xlane.xlu0 %231
    %v233 = vmul.f32 %v229, 0.03125
    %v234 = vmul.f32 %v232, 0.03125
    %v235 = vmul.f32 %v233, %v233
    %v236 = vsub.f32 %v234, %v235
    %v237 = vmax.f32 %v236, 0.0
    %v238 = vsub.f32 %v224, %v233
    %v239 = vadd.f32 %v237, 1e-05
    %v240 = vrsqrt.pop %v239
    %v241 = vmul.f32 %v238, %v240
    %242 = vset.pattern.permute.xlu0 4
    %243 = vperm.xlu0 %242, %v184
    %v244 = vpop.permute.xlu0 %243
    %v246 = vmul.f32 %v241, %v244
    %247 = vset.pattern.permute.xlu0 5
    %248 = vperm.xlu0 %247, %v184
    %v249 = vpop.permute.xlu0 %248
    %v251 = vadd.f32 %v246, %v249
    %vm252 = vcmp.gt.f32.partialorder %v251, 0.0
    %v253 = vmul.f32 %v251, 0.01
    %v254 = vsel %vm252, %v251, %v253
    %v255 = vadd.s32 %v18, 24
    %v256 = vshra.s32 %v16, 3
    %v257 = vand.u32 %v16, 7
    %v258 = vld [vmem:[%s2] sm:$0x1]
    %v259 = vmul.u32 %v257, 8
    %v260 = vadd.s32 %v259, %v258
    %v261 = vand.u32 %v260, 15
    %v262 = vshra.s32 %v260, 4
    %v263 = vmul.u32 %v256, 16
    %v264 = vadd.s32 %v263, %v261
    %v265 = vlaneseq
    %v266 = vshrl.u32 %v265, 7
    %v267 = vsub.s32 0, %v266
    %v268 = vrot.slane %v264, %v267
    %vm269 = vcmp.eq.s32.totalorder %v18, %v268
    %vm270 = vcmp.eq.s32.totalorder %v19, %v268
    %vm271 = vcmp.eq.s32.totalorder %v27, %v268
    %vm272 = vcmp.eq.s32.totalorder %v255, %v268
    %v273 = vsel %vm269, 1, 0
    %v274 = vsel %vm270, 1, 0
    %v275 = vsel %vm271, 1, 0
    %v276 = vsel %vm272, 1, 0
    %v277 = vcvt.s32.f32 %v273
    %v278 = vcvt.s32.f32 %v274
    %v279 = vcvt.s32.f32 %v275
    %v280 = vcvt.s32.f32 %v276
    %vm281 = vcmask 261120
    %v283 = vsel %vm281, %v254, 0
    %285 = vmatprep.subr.mxu0 0.0
    %286 = vmatpush1.msra.mxu0 0.0
    %287 = vmatprep.subr.mxu0 0.0
    %288 = vmatpush1.msra.mxu0 0.0
    %289 = vmatprep.subr.mxu0 0.0
    %290 = vmatpush1.msra.mxu0 0.0
    %291 = vmatprep.subr.mxu0 0.0
    %292 = vmatpush1.msra.mxu0 0.0
    %293 = vmatprep.subr.mxu0 0.0
    %294 = vmatpush1.msra.mxu0 0.0
    %295 = vmatprep.subr.mxu0 0.0
    %296 = vmatpush1.msra.mxu0 0.0
    %297 = vmatprep.subr.mxu0 0.0
    %298 = vmatpush1.msra.mxu0 0.0
    %299 = vmatprep.subr.mxu0 0.0
    %300 = vmatpush1.msra.mxu0 0.0
    %301 = vmatprep.subr.mxu0 0.0
    %302 = vmatpush1.msra.mxu0 0.0
    %303 = vmatprep.subr.mxu0 0.0
    %304 = vmatpush1.msra.mxu0 0.0
    %305 = vmatprep.subr.mxu0 0.0
    %306 = vmatpush1.msra.mxu0 0.0
    %307 = vmatprep.subr.mxu0 0.0
    %308 = vmatpush1.msra.mxu0 0.0
    %309 = vmatprep.subr.mxu0 0.0
    %310 = vmatpush1.msra.mxu0 %v280
    %311 = vmatprep.subr.mxu0 0.0
    %312 = vmatpush1.msra.mxu0 %v279
    %313 = vmatprep.subr.mxu0 0.0
    %314 = vmatpush1.msra.mxu0 %v278
    %315 = vmatprep.subr.mxu0 0.0
    %316 = vmatpush1.msra.mxu0 %v277
    %317 = vmatprep.subr.mxu0 0.0
    %318 = vmatpush2.msra.mxu0 0.0
    %319 = vmatprep.subr.mxu0 0.0
    %320 = vmatpush2.msra.mxu0 0.0
    %321 = vmatprep.subr.mxu0 0.0
    %322 = vmatpush2.msra.mxu0 0.0
    %323 = vmatprep.subr.mxu0 0.0
    %324 = vmatpush2.msra.mxu0 0.0
    %325 = vmatprep.subr.mxu0 0.0
    %326 = vmatpush2.msra.mxu0 0.0
    %327 = vmatprep.subr.mxu0 0.0
    %328 = vmatpush2.msra.mxu0 0.0
    %329 = vmatprep.subr.mxu0 0.0
    %330 = vmatpush2.msra.mxu0 0.0
    %331 = vmatprep.subr.mxu0 0.0
    %332 = vmatpush2.msra.mxu0 0.0
    %333 = vmatprep.subr.mxu0 0.0
    %334 = vmatpush2.msra.mxu0 0.0
    %335 = vmatprep.subr.mxu0 0.0
    %336 = vmatpush2.msra.mxu0 0.0
    %337 = vmatprep.subr.mxu0 0.0
    %338 = vmatpush2.msra.mxu0 0.0
    %339 = vmatprep.subr.mxu0 0.0
    %340 = vmatpush2.msra.mxu0 0.0
    %341 = vmatprep.subr.mxu0 0.0
    %342 = vmatpush2.msra.mxu0 0.0
    %343 = vmatprep.subr.mxu0 0.0
    %344 = vmatpush2.msra.mxu0 0.0
    %345 = vmatprep.subr.mxu0 0.0
    %346 = vmatpush2.msra.mxu0 0.0
    %347 = vmatprep.subr.mxu0 0.0
    %348 = vmatpush2.msra.mxu0 0.0
    %349 = vmatprep.mubr.f32.mxu0 0.0
    %350 = vmatmul.mubr.f32.gmra.mxu0 %v283
    %v351 = vpop.f32.mrf.mxu0
    %v352 = vadd.f32 0.0, %v351
    %v353 = vpop.f32.mrf.mxu0
    %354 = vdwg.mxu0
    %v355 = vlaneseq
    %v356 = vshrl.u32 %v355, 7
    %v357 = vsub.s32 0, %v356
    %v358 = vrot.slane %v262, %v357
    %vm359 = vcmp.eq.s32.totalorder %v18, %v358
    %v360 = vsel %vm359, 1, 0
    %v361 = vcvt.s32.f32 %v360
    %v362 = vmul.f32 %v352, %v361
    %vm363 = vcmask 125952
    %v364 = vsel %vm363, %v362, 0.0
    %v365 = vrot.slane %v364, 4
    %v366 = vadd.f32 %v364, %v365
    %v367 = vrot.slane %v366, 2
    %v368 = vadd.f32 %v366, %v367
    %v369 = vrot.slane %v368, 1
    %v370 = vadd.f32 %v368, %v369
    %v371 = vld [vmem:[%s2 + $0x1] sm:$0x1]
    %v372 = vadd.s32 %v259, 4
    %v373 = vadd.s32 %v372, %v371
    %v374 = vand.u32 %v373, 15
    %v375 = vshra.s32 %v373, 4
    %v376 = vadd.s32 %v263, %v374
    %v377 = vlaneseq
    %v378 = vshrl.u32 %v377, 7
    %v379 = vsub.s32 0, %v378
    %v380 = vrot.slane %v376, %v379
    %vm381 = vcmp.eq.s32.totalorder %v18, %v380
    %vm382 = vcmp.eq.s32.totalorder %v19, %v380
    %vm383 = vcmp.eq.s32.totalorder %v27, %v380
    %vm384 = vcmp.eq.s32.totalorder %v255, %v380
    %v385 = vsel %vm381, 1, 0
    %v386 = vsel %vm382, 1, 0
    %v387 = vsel %vm383, 1, 0
    %v388 = vsel %vm384, 1, 0
    %v389 = vcvt.s32.f32 %v385
    %v390 = vcvt.s32.f32 %v386
    %v391 = vcvt.s32.f32 %v387
    %v392 = vcvt.s32.f32 %v388
    %393 = vmatprep.subr.mxu0 0.0
    %394 = vmatpush1.msra.mxu0 0.0
    %395 = vmatprep.subr.mxu0 0.0
    %396 = vmatpush1.msra.mxu0 0.0
    %397 = vmatprep.subr.mxu0 0.0
    %398 = vmatpush1.msra.mxu0 0.0
    %399 = vmatprep.subr.mxu0 0.0
    %400 = vmatpush1.msra.mxu0 0.0
    %401 = vmatprep.subr.mxu0 0.0
    %402 = vmatpush1.msra.mxu0 0.0
    %403 = vmatprep.subr.mxu0 0.0
    %404 = vmatpush1.msra.mxu0 0.0
    %405 = vmatprep.subr.mxu0 0.0
    %406 = vmatpush1.msra.mxu0 0.0
    %407 = vmatprep.subr.mxu0 0.0
    %408 = vmatpush1.msra.mxu0 0.0
    %409 = vmatprep.subr.mxu0 0.0
    %410 = vmatpush1.msra.mxu0 0.0
    %411 = vmatprep.subr.mxu0 0.0
    %412 = vmatpush1.msra.mxu0 0.0
    %413 = vmatprep.subr.mxu0 0.0
    %414 = vmatpush1.msra.mxu0 0.0
    %415 = vmatprep.subr.mxu0 0.0
    %416 = vmatpush1.msra.mxu0 0.0
    %417 = vmatprep.subr.mxu0 0.0
    %418 = vmatpush1.msra.mxu0 %v392
    %419 = vmatprep.subr.mxu0 0.0
    %420 = vmatpush1.msra.mxu0 %v391
    %421 = vmatprep.subr.mxu0 0.0
    %422 = vmatpush1.msra.mxu0 %v390
    %423 = vmatprep.subr.mxu0 0.0
    %424 = vmatpush1.msra.mxu0 %v389
    %425 = vmatprep.subr.mxu0 0.0
    %426 = vmatpush2.msra.mxu0 0.0
    %427 = vmatprep.subr.mxu0 0.0
    %428 = vmatpush2.msra.mxu0 0.0
    %429 = vmatprep.subr.mxu0 0.0
    %430 = vmatpush2.msra.mxu0 0.0
    %431 = vmatprep.subr.mxu0 0.0
    %432 = vmatpush2.msra.mxu0 0.0
    %433 = vmatprep.subr.mxu0 0.0
    %434 = vmatpush2.msra.mxu0 0.0
    %435 = vmatprep.subr.mxu0 0.0
    %436 = vmatpush2.msra.mxu0 0.0
    %437 = vmatprep.subr.mxu0 0.0
    %438 = vmatpush2.msra.mxu0 0.0
    %439 = vmatprep.subr.mxu0 0.0
    %440 = vmatpush2.msra.mxu0 0.0
    %441 = vmatprep.subr.mxu0 0.0
    %442 = vmatpush2.msra.mxu0 0.0
    %443 = vmatprep.subr.mxu0 0.0
    %444 = vmatpush2.msra.mxu0 0.0
    %445 = vmatprep.subr.mxu0 0.0
    %446 = vmatpush2.msra.mxu0 0.0
    %447 = vmatprep.subr.mxu0 0.0
    %448 = vmatpush2.msra.mxu0 0.0
    %449 = vmatprep.subr.mxu0 0.0
    %450 = vmatpush2.msra.mxu0 0.0
    %451 = vmatprep.subr.mxu0 0.0
    %452 = vmatpush2.msra.mxu0 0.0
    %453 = vmatprep.subr.mxu0 0.0
    %454 = vmatpush2.msra.mxu0 0.0
    %455 = vmatprep.subr.mxu0 0.0
    %456 = vmatpush2.msra.mxu0 0.0
    %457 = vmatprep.mubr.f32.mxu0 0.0
    %458 = vmatmul.mubr.f32.gmra.mxu0 %v283
    %v459 = vpop.f32.mrf.mxu0
    %v460 = vadd.f32 0.0, %v459
    %v461 = vpop.f32.mrf.mxu0
    %462 = vdwg.mxu0
    %v463 = vlaneseq
    %v464 = vshrl.u32 %v463, 7
    %v465 = vsub.s32 0, %v464
    %v466 = vrot.slane %v375, %v465
    %vm467 = vcmp.eq.s32.totalorder %v18, %v466
    %v468 = vsel %vm467, 1, 0
    %v469 = vcvt.s32.f32 %v468
    %v470 = vmul.f32 %v460, %v469
    %v471 = vsel %vm363, %v470, 0.0
    %v472 = vrot.slane %v471, 4
    %v473 = vadd.f32 %v471, %v472
    %v474 = vrot.slane %v473, 2
    %v475 = vadd.f32 %v473, %v474
    %v476 = vrot.slane %v475, 1
    %v477 = vadd.f32 %v475, %v476
    %v478 = vld [vmem:[%s1 + $0x4] sm:$0xff]
    %480 = vset.pattern.permute.xlu0 0
    %481 = vperm.xlu0 %480, %v478
    %v482 = vpop.permute.xlu0 %481
    %v484 = vmul.f32 %v482, %v370
    %485 = vset.pattern.permute.xlu0 1
    %486 = vperm.xlu0 %485, %v478
    %v487 = vpop.permute.xlu0 %486
    %v489 = vmul.f32 %v487, %v477
    %v490 = vadd.f32 %v484, %v489
    %v491 = vmul.f32 %v490, %v490
    %v492 = vsel %vm37, %v490, 0.0
    %493 = vadd.xlane.f32.xlu0 %v492
    %v494 = vpop.xlane.xlu0 %493
    %v495 = vsel %vm37, %v491, 0.0
    %496 = vadd.xlane.f32.xlu0 %v495
    %v497 = vpop.xlane.xlu0 %496
    %v498 = vmul.f32 %v494, 0.0625
    %v499 = vmul.f32 %v497, 0.0625
    %v500 = vmul.f32 %v498, %v498
    %v501 = vsub.f32 %v499, %v500
    %v502 = vmax.f32 %v501, 0.0
    %v503 = vsub.f32 %v490, %v498
    %v504 = vadd.f32 %v502, 1e-05
    %v505 = vrsqrt.pop %v504
    %v506 = vmul.f32 %v503, %v505
    %507 = vset.pattern.permute.xlu0 2
    %508 = vperm.xlu0 %507, %v478
    %v509 = vpop.permute.xlu0 %508
    %v511 = vmul.f32 %v506, %v509
    %512 = vset.pattern.permute.xlu0 3
    %513 = vperm.xlu0 %512, %v478
    %v514 = vpop.permute.xlu0 %513
    %v516 = vadd.f32 %v511, %v514
    %vm517 = vcmp.gt.f32.partialorder %v516, 0.0
    %v518 = vmul.f32 %v516, 0.01
    %v519 = vsel %vm517, %v516, %v518
    %v520 = vshra.s32 %v16, 2
    %v521 = vand.u32 %v16, 3
    %v522 = vld [vmem:[%s2 + $0x2] sm:$0x1]
    %v523 = vmul.u32 %v521, 8
    %v524 = vadd.s32 %v523, %v522
    %v525 = vand.u32 %v524, 7
    %v526 = vshra.s32 %v524, 3
    %v527 = vmul.u32 %v520, 8
    %v528 = vadd.s32 %v527, %v525
    %v529 = vlaneseq
    %v530 = vshrl.u32 %v529, 7
    %v531 = vsub.s32 0, %v530
    %v532 = vrot.slane %v528, %v531
    %vm533 = vcmp.eq.s32.totalorder %v18, %v532
    %vm534 = vcmp.eq.s32.totalorder %v19, %v532
    %v535 = vsel %vm533, 1, 0
    %v536 = vsel %vm534, 1, 0
    %v537 = vcvt.s32.f32 %v535
    %v538 = vcvt.s32.f32 %v536
    %v540 = vsel %vm37, %v519, 0
    %542 = vmatprep.subr.mxu0 0.0
    %543 = vmatpush1.msra.mxu0 0.0
    %544 = vmatprep.subr.mxu0 0.0
    %545 = vmatpush1.msra.mxu0 0.0
    %546 = vmatprep.subr.mxu0 0.0
    %547 = vmatpush1.msra.mxu0 0.0
    %548 = vmatprep.subr.mxu0 0.0
    %549 = vmatpush1.msra.mxu0 0.0
    %550 = vmatprep.subr.mxu0 0.0
    %551 = vmatpush1.msra.mxu0 0.0
    %552 = vmatprep.subr.mxu0 0.0
    %553 = vmatpush1.msra.mxu0 0.0
    %554 = vmatprep.subr.mxu0 0.0
    %555 = vmatpush1.msra.mxu0 0.0
    %556 = vmatprep.subr.mxu0 0.0
    %557 = vmatpush1.msra.mxu0 0.0
    %558 = vmatprep.subr.mxu0 0.0
    %559 = vmatpush1.msra.mxu0 0.0
    %560 = vmatprep.subr.mxu0 0.0
    %561 = vmatpush1.msra.mxu0 0.0
    %562 = vmatprep.subr.mxu0 0.0
    %563 = vmatpush1.msra.mxu0 0.0
    %564 = vmatprep.subr.mxu0 0.0
    %565 = vmatpush1.msra.mxu0 0.0
    %566 = vmatprep.subr.mxu0 0.0
    %567 = vmatpush1.msra.mxu0 0.0
    %568 = vmatprep.subr.mxu0 0.0
    %569 = vmatpush1.msra.mxu0 0.0
    %570 = vmatprep.subr.mxu0 0.0
    %571 = vmatpush1.msra.mxu0 %v538
    %572 = vmatprep.subr.mxu0 0.0
    %573 = vmatpush1.msra.mxu0 %v537
    %574 = vmatprep.subr.mxu0 0.0
    %575 = vmatpush2.msra.mxu0 0.0
    %576 = vmatprep.subr.mxu0 0.0
    %577 = vmatpush2.msra.mxu0 0.0
    %578 = vmatprep.subr.mxu0 0.0
    %579 = vmatpush2.msra.mxu0 0.0
    %580 = vmatprep.subr.mxu0 0.0
    %581 = vmatpush2.msra.mxu0 0.0
    %582 = vmatprep.subr.mxu0 0.0
    %583 = vmatpush2.msra.mxu0 0.0
    %584 = vmatprep.subr.mxu0 0.0
    %585 = vmatpush2.msra.mxu0 0.0
    %586 = vmatprep.subr.mxu0 0.0
    %587 = vmatpush2.msra.mxu0 0.0
    %588 = vmatprep.subr.mxu0 0.0
    %589 = vmatpush2.msra.mxu0 0.0
    %590 = vmatprep.subr.mxu0 0.0
    %591 = vmatpush2.msra.mxu0 0.0
    %592 = vmatprep.subr.mxu0 0.0
    %593 = vmatpush2.msra.mxu0 0.0
    %594 = vmatprep.subr.mxu0 0.0
    %595 = vmatpush2.msra.mxu0 0.0
    %596 = vmatprep.subr.mxu0 0.0
    %597 = vmatpush2.msra.mxu0 0.0
    %598 = vmatprep.subr.mxu0 0.0
    %599 = vmatpush2.msra.mxu0 0.0
    %600 = vmatprep.subr.mxu0 0.0
    %601 = vmatpush2.msra.mxu0 0.0
    %602 = vmatprep.subr.mxu0 0.0
    %603 = vmatpush2.msra.mxu0 0.0
    %604 = vmatprep.subr.mxu0 0.0
    %605 = vmatpush2.msra.mxu0 0.0
    %606 = vmatprep.mubr.f32.mxu0 0.0
    %607 = vmatmul.mubr.f32.gmra.mxu0 %v540
    %v608 = vpop.f32.mrf.mxu0
    %v609 = vadd.f32 0.0, %v608
    %v610 = vpop.f32.mrf.mxu0
    %611 = vdwg.mxu0
    %v612 = vlaneseq
    %v613 = vshrl.u32 %v612, 7
    %v614 = vsub.s32 0, %v613
    %v615 = vrot.slane %v526, %v614
    %vm616 = vcmp.eq.s32.totalorder %v18, %v615
    %v617 = vsel %vm616, 1, 0
    %v618 = vcvt.s32.f32 %v617
    %v619 = vmul.f32 %v609, %v618
    %vm620 = vcmask 60416
    %v621 = vsel %vm620, %v619, 0.0
    %v622 = vrot.slane %v621, 4
    %v623 = vadd.f32 %v621, %v622
    %v624 = vrot.slane %v623, 2
    %v625 = vadd.f32 %v623, %v624
    %v626 = vrot.slane %v625, 1
    %v627 = vadd.f32 %v625, %v626
    %vm628 = vcmp.eq.s32.totalorder %v18, 0
    %v629 = vsel %vm628, 1, 0
    %v630 = vcvt.s32.f32 %v629
    %v631 = vmul.f32 %v630, %v627
    %v633 = vrot.slane %v618, 4
    %v635 = vmul.f32 %v609, %v633
    %v637 = vrot.slane %v635, 4
    %v639 = vsel %vm620, %v637, 0.0
    %v640 = vrot.slane %v639, 4
    %v641 = vadd.f32 %v639, %v640
    %v642 = vrot.slane %v641, 2
    %v643 = vadd.f32 %v641, %v642
    %v644 = vrot.slane %v643, 1
    %v645 = vadd.f32 %v643, %v644
    %vm646 = vcmp.eq.s32.totalorder %v18, 1
    %v647 = vsel %vm646, 1, 0
    %v648 = vcvt.s32.f32 %v647
    %v649 = vmul.f32 %v648, %v645
    %v650 = vadd.f32 %v631, %v649
    %v651 = vld [vmem:[%s2 + $0x3] sm:$0x1]
    %v652 = vadd.s32 %v523, 4
    %v653 = vadd.s32 %v652, %v651
    %v654 = vand.u32 %v653, 7
    %v655 = vshra.s32 %v653, 3
    %v656 = vadd.s32 %v527, %v654
    %v657 = vlaneseq
    %v658 = vshrl.u32 %v657, 7
    %v659 = vsub.s32 0, %v658
    %v660 = vrot.slane %v656, %v659
    %vm661 = vcmp.eq.s32.totalorder %v18, %v660
    %vm662 = vcmp.eq.s32.totalorder %v19, %v660
    %v663 = vsel %vm661, 1, 0
    %v664 = vsel %vm662, 1, 0
    %v665 = vcvt.s32.f32 %v663
    %v666 = vcvt.s32.f32 %v664
    %667 = vmatprep.subr.mxu0 0.0
    %668 = vmatpush1.msra.mxu0 0.0
    %669 = vmatprep.subr.mxu0 0.0
    %670 = vmatpush1.msra.mxu0 0.0
    %671 = vmatprep.subr.mxu0 0.0
    %672 = vmatpush1.msra.mxu0 0.0
    %673 = vmatprep.subr.mxu0 0.0
    %674 = vmatpush1.msra.mxu0 0.0
    %675 = vmatprep.subr.mxu0 0.0
    %676 = vmatpush1.msra.mxu0 0.0
    %677 = vmatprep.subr.mxu0 0.0
    %678 = vmatpush1.msra.mxu0 0.0
    %679 = vmatprep.subr.mxu0 0.0
    %680 = vmatpush1.msra.mxu0 0.0
    %681 = vmatprep.subr.mxu0 0.0
    %682 = vmatpush1.msra.mxu0 0.0
    %683 = vmatprep.subr.mxu0 0.0
    %684 = vmatpush1.msra.mxu0 0.0
    %685 = vmatprep.subr.mxu0 0.0
    %686 = vmatpush1.msra.mxu0 0.0
    %687 = vmatprep.subr.mxu0 0.0
    %688 = vmatpush1.msra.mxu0 0.0
    %689 = vmatprep.subr.mxu0 0.0
    %690 = vmatpush1.msra.mxu0 0.0
    %691 = vmatprep.subr.mxu0 0.0
    %692 = vmatpush1.msra.mxu0 0.0
    %693 = vmatprep.subr.mxu0 0.0
    %694 = vmatpush1.msra.mxu0 0.0
    %695 = vmatprep.subr.mxu0 0.0
    %696 = vmatpush1.msra.mxu0 %v666
    %697 = vmatprep.subr.mxu0 0.0
    %698 = vmatpush1.msra.mxu0 %v665
    %699 = vmatprep.subr.mxu0 0.0
    %700 = vmatpush2.msra.mxu0 0.0
    %701 = vmatprep.subr.mxu0 0.0
    %702 = vmatpush2.msra.mxu0 0.0
    %703 = vmatprep.subr.mxu0 0.0
    %704 = vmatpush2.msra.mxu0 0.0
    %705 = vmatprep.subr.mxu0 0.0
    %706 = vmatpush2.msra.mxu0 0.0
    %707 = vmatprep.subr.mxu0 0.0
    %708 = vmatpush2.msra.mxu0 0.0
    %709 = vmatprep.subr.mxu0 0.0
    %710 = vmatpush2.msra.mxu0 0.0
    %711 = vmatprep.subr.mxu0 0.0
    %712 = vmatpush2.msra.mxu0 0.0
    %713 = vmatprep.subr.mxu0 0.0
    %714 = vmatpush2.msra.mxu0 0.0
    %715 = vmatprep.subr.mxu0 0.0
    %716 = vmatpush2.msra.mxu0 0.0
    %717 = vmatprep.subr.mxu0 0.0
    %718 = vmatpush2.msra.mxu0 0.0
    %719 = vmatprep.subr.mxu0 0.0
    %720 = vmatpush2.msra.mxu0 0.0
    %721 = vmatprep.subr.mxu0 0.0
    %722 = vmatpush2.msra.mxu0 0.0
    %723 = vmatprep.subr.mxu0 0.0
    %724 = vmatpush2.msra.mxu0 0.0
    %725 = vmatprep.subr.mxu0 0.0
    %726 = vmatpush2.msra.mxu0 0.0
    %727 = vmatprep.subr.mxu0 0.0
    %728 = vmatpush2.msra.mxu0 0.0
    %729 = vmatprep.subr.mxu0 0.0
    %730 = vmatpush2.msra.mxu0 0.0
    %731 = vmatprep.mubr.f32.mxu0 0.0
    %732 = vmatmul.mubr.f32.gmra.mxu0 %v540
    %v733 = vpop.f32.mrf.mxu0
    %v734 = vadd.f32 0.0, %v733
    %v735 = vpop.f32.mrf.mxu0
    %736 = vdwg.mxu0
    %v737 = vlaneseq
    %v738 = vshrl.u32 %v737, 7
    %v739 = vsub.s32 0, %v738
    %v740 = vrot.slane %v655, %v739
    %vm741 = vcmp.eq.s32.totalorder %v18, %v740
    %v742 = vsel %vm741, 1, 0
    %v743 = vcvt.s32.f32 %v742
    %v744 = vmul.f32 %v734, %v743
    %v745 = vsel %vm620, %v744, 0.0
    %v746 = vrot.slane %v745, 4
    %v747 = vadd.f32 %v745, %v746
    %v748 = vrot.slane %v747, 2
    %v749 = vadd.f32 %v747, %v748
    %v750 = vrot.slane %v749, 1
    %v751 = vadd.f32 %v749, %v750
    %v752 = vmul.f32 %v630, %v751
    %v754 = vrot.slane %v743, 4
    %v756 = vmul.f32 %v734, %v754
    %v758 = vrot.slane %v756, 4
    %v760 = vsel %vm620, %v758, 0.0
    %v761 = vrot.slane %v760, 4
    %v762 = vadd.f32 %v760, %v761
    %v763 = vrot.slane %v762, 2
    %v764 = vadd.f32 %v762, %v763
    %v765 = vrot.slane %v764, 1
    %v766 = vadd.f32 %v764, %v765
    %v767 = vmul.f32 %v648, %v766
    %v768 = vadd.f32 %v752, %v767
    %v769 = vld [vmem:[%s1 + $0xc] sm:$0xff]
    %771 = vset.pattern.permute.xlu0 0
    %772 = vperm.xlu0 %771, %v769
    %v773 = vpop.permute.xlu0 %772
    %v775 = vlaneseq
    %v776 = vshrl.u32 %v775, 7
    %v777 = vsub.s32 0, %v776
    %v778 = vrot.slane %v650, %v777
    %v779 = vmul.f32 %v773, %v778
    %780 = vset.pattern.permute.xlu0 1
    %781 = vperm.xlu0 %780, %v769
    %v782 = vpop.permute.xlu0 %781
    %v784 = vlaneseq
    %v785 = vshrl.u32 %v784, 7
    %v786 = vsub.s32 1, %v785
    %v787 = vrot.slane %v650, %v786
    %v788 = vmul.f32 %v782, %v787
    %v789 = vadd.f32 %v779, %v788
    %790 = vset.pattern.permute.xlu0 2
    %791 = vperm.xlu0 %790, %v769
    %v792 = vpop.permute.xlu0 %791
    %v794 = vlaneseq
    %v795 = vshrl.u32 %v794, 7
    %v796 = vsub.s32 0, %v795
    %v797 = vrot.slane %v768, %v796
    %v798 = vmul.f32 %v792, %v797
    %799 = vset.pattern.permute.xlu0 3
    %800 = vperm.xlu0 %799, %v769
    %v801 = vpop.permute.xlu0 %800
    %v803 = vlaneseq
    %v804 = vshrl.u32 %v803, 7
    %v805 = vsub.s32 1, %v804
    %v806 = vrot.slane %v768, %v805
    %v807 = vmul.f32 %v801, %v806
    %v808 = vadd.f32 %v798, %v807
    %v809 = vadd.f32 %v789, %v808
    %v810 = vmul.f32 %v809, %v809
    %vm811 = vcmask 64512
    %v812 = vsel %vm811, %v809, 0.0
    %813 = vadd.xlane.f32.xlu0 %v812
    %v814 = vpop.xlane.xlu0 %813
    %v815 = vsel %vm811, %v810, 0.0
    %816 = vadd.xlane.f32.xlu0 %v815
    %v817 = vpop.xlane.xlu0 %816
    %v818 = vmul.f32 %v814, 0.125
    %v819 = vmul.f32 %v817, 0.125
    %v820 = vmul.f32 %v818, %v818
    %v821 = vsub.f32 %v819, %v820
    %v822 = vmax.f32 %v821, 0.0
    %v823 = vsub.f32 %v809, %v818
    %v824 = vadd.f32 %v822, 1e-05
    %v825 = vrsqrt.pop %v824
    %v826 = vmul.f32 %v823, %v825
    %827 = vset.pattern.permute.xlu0 4
    %828 = vperm.xlu0 %827, %v769
    %v829 = vpop.permute.xlu0 %828
    %v831 = vmul.f32 %v826, %v829
    %832 = vset.pattern.permute.xlu0 5
    %833 = vperm.xlu0 %832, %v769
    %v834 = vpop.permute.xlu0 %833
    %v836 = vadd.f32 %v831, %v834
    %vm837 = vcmp.gt.f32.partialorder %v836, 0.0
    %v838 = vmul.f32 %v836, 0.01
    %v839 = vsel %vm837, %v836, %v838
    %v840 = vshra.s32 %v16, 1
    %v841 = vand.u32 %v16, 1
    %v842 = vld [vmem:[%s2 + $0x4] sm:$0x1]
    %v843 = vmul.u32 %v841, 8
    %v844 = vadd.s32 %v843, %v842
    %v845 = vand.u32 %v844, 3
    %v846 = vshra.s32 %v844, 2
    %v847 = vmul.u32 %v840, 4
    %v848 = vadd.s32 %v847, %v845
    %v849 = vlaneseq
    %v850 = vshrl.u32 %v849, 7
    %v851 = vsub.s32 0, %v850
    %v852 = vrot.slane %v848, %v851
    %vm853 = vcmp.eq.s32.totalorder %v18, %v852
    %v854 = vsel %vm853, 1, 0
    %v855 = vcvt.s32.f32 %v854
    %857 = vset.pattern.permute.xlu0 0
    %858 = vperm.xlu0 %857, %v839
    %v859 = vpop.permute.xlu0 %858
    %v861 = vlaneseq
    %v862 = vshrl.u32 %v861, 7
    %v863 = vsub.s32 0, %v862
    %v864 = vrot.slane %v855, %v863
    %v865 = vmul.f32 %v859, %v864
    %866 = vset.pattern.permute.xlu0 1
    %867 = vperm.xlu0 %866, %v839
    %v868 = vpop.permute.xlu0 %867
    %v870 = vlaneseq
    %v871 = vshrl.u32 %v870, 7
    %v872 = vsub.s32 1, %v871
    %v873 = vrot.slane %v855, %v872
    %v874 = vmul.f32 %v868, %v873
    %v875 = vadd.f32 %v865, %v874
    %876 = vset.pattern.permute.xlu0 2
    %877 = vperm.xlu0 %876, %v839
    %v878 = vpop.permute.xlu0 %877
    %v880 = vlaneseq
    %v881 = vshrl.u32 %v880, 7
    %v882 = vsub.s32 2, %v881
    %v883 = vrot.slane %v855, %v882
    %v884 = vmul.f32 %v878, %v883
    %v885 = vadd.f32 %v875, %v884
    %886 = vset.pattern.permute.xlu0 3
    %887 = vperm.xlu0 %886, %v839
    %v888 = vpop.permute.xlu0 %887
    %v890 = vlaneseq
    %v891 = vshrl.u32 %v890, 7
    %v892 = vsub.s32 3, %v891
    %v893 = vrot.slane %v855, %v892
    %v894 = vmul.f32 %v888, %v893
    %v895 = vadd.f32 %v885, %v894
    %896 = vset.pattern.permute.xlu0 4
    %897 = vperm.xlu0 %896, %v839
    %v898 = vpop.permute.xlu0 %897
    %v900 = vlaneseq
    %v901 = vshrl.u32 %v900, 7
    %v902 = vsub.s32 4, %v901
    %v903 = vrot.slane %v855, %v902
    %v904 = vmul.f32 %v898, %v903
    %v905 = vadd.f32 %v895, %v904
    %906 = vset.pattern.permute.xlu0 5
    %907 = vperm.xlu0 %906, %v839
    %v908 = vpop.permute.xlu0 %907
    %v910 = vlaneseq
    %v911 = vshrl.u32 %v910, 7
    %v912 = vsub.s32 5, %v911
    %v913 = vrot.slane %v855, %v912
    %v914 = vmul.f32 %v908, %v913
    %v915 = vadd.f32 %v905, %v914
    %916 = vset.pattern.permute.xlu0 6
    %917 = vperm.xlu0 %916, %v839
    %v918 = vpop.permute.xlu0 %917
    %v920 = vlaneseq
    %v921 = vshrl.u32 %v920, 7
    %v922 = vsub.s32 6, %v921
    %v923 = vrot.slane %v855, %v922
    %v924 = vmul.f32 %v918, %v923
    %v925 = vadd.f32 %v915, %v924
    %926 = vset.pattern.permute.xlu0 7
    %927 = vperm.xlu0 %926, %v839
    %v928 = vpop.permute.xlu0 %927
    %v930 = vlaneseq
    %v931 = vshrl.u32 %v930, 7
    %v932 = vsub.s32 7, %v931
    %v933 = vrot.slane %v855, %v932
    %v934 = vmul.f32 %v928, %v933
    %v935 = vadd.f32 %v925, %v934
    %v936 = vlaneseq
    %v937 = vshrl.u32 %v936, 7
    %v938 = vsub.s32 0, %v937
    %v939 = vrot.slane %v846, %v938
    %vm940 = vcmp.eq.s32.totalorder %v18, %v939
    %v941 = vsel %vm940, 1, 0
    %v942 = vcvt.s32.f32 %v941
    %v943 = vmul.f32 %v935, %v942
    %vm944 = vcmask 27648
    %v945 = vsel %vm944, %v943, 0.0
    %v946 = vrot.slane %v945, 4
    %v947 = vadd.f32 %v945, %v946
    %v948 = vrot.slane %v947, 2
    %v949 = vadd.f32 %v947, %v948
    %v950 = vrot.slane %v949, 1
    %v951 = vadd.f32 %v949, %v950
    %v952 = vmul.f32 %v630, %v951
    %v954 = vrot.slane %v942, 4
    %v956 = vmul.f32 %v935, %v954
    %v958 = vrot.slane %v956, 4
    %v960 = vsel %vm944, %v958, 0.0
    %v961 = vrot.slane %v960, 4
    %v962 = vadd.f32 %v960, %v961
    %v963 = vrot.slane %v962, 2
    %v964 = vadd.f32 %v962, %v963
    %v965 = vrot.slane %v964, 1
    %v966 = vadd.f32 %v964, %v965
    %v967 = vmul.f32 %v648, %v966
    %v968 = vadd.f32 %v952, %v967
    %v969 = vld [vmem:[%s2 + $0x5] sm:$0x1]
    %v970 = vadd.s32 %v843, 4
    %v971 = vadd.s32 %v970, %v969
    %v972 = vand.u32 %v971, 3
    %v973 = vshra.s32 %v971, 2
    %v974 = vadd.s32 %v847, %v972
    %v975 = vlaneseq
    %v976 = vshrl.u32 %v975, 7
    %v977 = vsub.s32 0, %v976
    %v978 = vrot.slane %v974, %v977
    %vm979 = vcmp.eq.s32.totalorder %v18, %v978
    %v980 = vsel %vm979, 1, 0
    %v981 = vcvt.s32.f32 %v980
    %v982 = vlaneseq
    %v983 = vshrl.u32 %v982, 7
    %v984 = vsub.s32 0, %v983
    %v985 = vrot.slane %v981, %v984
    %v986 = vmul.f32 %v859, %v985
    %v987 = vlaneseq
    %v988 = vshrl.u32 %v987, 7
    %v989 = vsub.s32 1, %v988
    %v990 = vrot.slane %v981, %v989
    %v991 = vmul.f32 %v868, %v990
    %v992 = vadd.f32 %v986, %v991
    %v993 = vlaneseq
    %v994 = vshrl.u32 %v993, 7
    %v995 = vsub.s32 2, %v994
    %v996 = vrot.slane %v981, %v995
    %v997 = vmul.f32 %v878, %v996
    %v998 = vadd.f32 %v992, %v997
    %v999 = vlaneseq
    %v1000 = vshrl.u32 %v999, 7
    %v1001 = vsub.s32 3, %v1000
    %v1002 = vrot.slane %v981, %v1001
    %v1003 = vmul.f32 %v888, %v1002
    %v1004 = vadd.f32 %v998, %v1003
    %v1005 = vlaneseq
    %v1006 = vshrl.u32 %v1005, 7
    %v1007 = vsub.s32 4, %v1006
    %v1008 = vrot.slane %v981, %v1007
    %v1009 = vmul.f32 %v898, %v1008
    %v1010 = vadd.f32 %v1004, %v1009
    %v1011 = vlaneseq
    %v1012 = vshrl.u32 %v1011, 7
    %v1013 = vsub.s32 5, %v1012
    %v1014 = vrot.slane %v981, %v1013
    %v1015 = vmul.f32 %v908, %v1014
    %v1016 = vadd.f32 %v1010, %v1015
    %v1017 = vlaneseq
    %v1018 = vshrl.u32 %v1017, 7
    %v1019 = vsub.s32 6, %v1018
    %v1020 = vrot.slane %v981, %v1019
    %v1021 = vmul.f32 %v918, %v1020
    %v1022 = vadd.f32 %v1016, %v1021
    %v1023 = vlaneseq
    %v1024 = vshrl.u32 %v1023, 7
    %v1025 = vsub.s32 7, %v1024
    %v1026 = vrot.slane %v981, %v1025
    %v1027 = vmul.f32 %v928, %v1026
    %v1028 = vadd.f32 %v1022, %v1027
    %v1029 = vlaneseq
    %v1030 = vshrl.u32 %v1029, 7
    %v1031 = vsub.s32 0, %v1030
    %v1032 = vrot.slane %v973, %v1031
    %vm1033 = vcmp.eq.s32.totalorder %v18, %v1032
    %v1034 = vsel %vm1033, 1, 0
    %v1035 = vcvt.s32.f32 %v1034
    %v1036 = vmul.f32 %v1028, %v1035
    %v1037 = vsel %vm944, %v1036, 0.0
    %v1038 = vrot.slane %v1037, 4
    %v1039 = vadd.f32 %v1037, %v1038
    %v1040 = vrot.slane %v1039, 2
    %v1041 = vadd.f32 %v1039, %v1040
    %v1042 = vrot.slane %v1041, 1
    %v1043 = vadd.f32 %v1041, %v1042
    %v1044 = vmul.f32 %v630, %v1043
    %v1046 = vrot.slane %v1035, 4
    %v1048 = vmul.f32 %v1028, %v1046
    %v1050 = vrot.slane %v1048, 4
    %v1052 = vsel %vm944, %v1050, 0.0
    %v1053 = vrot.slane %v1052, 4
    %v1054 = vadd.f32 %v1052, %v1053
    %v1055 = vrot.slane %v1054, 2
    %v1056 = vadd.f32 %v1054, %v1055
    %v1057 = vrot.slane %v1056, 1
    %v1058 = vadd.f32 %v1056, %v1057
    %v1059 = vmul.f32 %v648, %v1058
    %v1060 = vadd.f32 %v1044, %v1059
    %v1061 = vld [vmem:[%s1 + $0x14] sm:$0xff]
    %v1062 = vld [vmem:[%s1 + $0x1c] sm:$0xff]
    %1064 = vset.pattern.permute.xlu0 0
    %1065 = vperm.xlu0 %1064, %v1061
    %v1066 = vpop.permute.xlu0 %1065
    %1069 = vset.pattern.permute.xlu0 0
    %1070 = vperm.xlu0 %1069, %v1062
    %v1071 = vpop.permute.xlu0 %1070
    %v1073 = vlaneseq
    %v1074 = vshrl.u32 %v1073, 7
    %v1075 = vsub.s32 0, %v1074
    %v1076 = vrot.slane %v968, %v1075
    %v1077 = vmul.f32 %v1066, %v1076
    %v1078 = vmul.f32 %v1071, %v1076
    %1079 = vset.pattern.permute.xlu0 1
    %1080 = vperm.xlu0 %1079, %v1061
    %v1081 = vpop.permute.xlu0 %1080
    %1083 = vset.pattern.permute.xlu0 1
    %1084 = vperm.xlu0 %1083, %v1062
    %v1085 = vpop.permute.xlu0 %1084
    %v1087 = vlaneseq
    %v1088 = vshrl.u32 %v1087, 7
    %v1089 = vsub.s32 1, %v1088
    %v1090 = vrot.slane %v968, %v1089
    %v1091 = vmul.f32 %v1081, %v1090
    %v1092 = vmul.f32 %v1085, %v1090
    %v1093 = vadd.f32 %v1077, %v1091
    %v1094 = vadd.f32 %v1078, %v1092
    %1095 = vset.pattern.permute.xlu0 2
    %1096 = vperm.xlu0 %1095, %v1061
    %v1097 = vpop.permute.xlu0 %1096
    %1099 = vset.pattern.permute.xlu0 2
    %1100 = vperm.xlu0 %1099, %v1062
    %v1101 = vpop.permute.xlu0 %1100
    %v1103 = vlaneseq
    %v1104 = vshrl.u32 %v1103, 7
    %v1105 = vsub.s32 0, %v1104
    %v1106 = vrot.slane %v1060, %v1105
    %v1107 = vmul.f32 %v1097, %v1106
    %v1108 = vmul.f32 %v1101, %v1106
    %1109 = vset.pattern.permute.xlu0 3
    %1110 = vperm.xlu0 %1109, %v1061
    %v1111 = vpop.permute.xlu0 %1110
    %1113 = vset.pattern.permute.xlu0 3
    %1114 = vperm.xlu0 %1113, %v1062
    %v1115 = vpop.permute.xlu0 %1114
    %v1117 = vlaneseq
    %v1118 = vshrl.u32 %v1117, 7
    %v1119 = vsub.s32 1, %v1118
    %v1120 = vrot.slane %v1060, %v1119
    %v1121 = vmul.f32 %v1111, %v1120
    %v1122 = vmul.f32 %v1115, %v1120
    %v1123 = vadd.f32 %v1107, %v1121
    %v1124 = vadd.f32 %v1108, %v1122
    %v1125 = vadd.f32 %v1093, %v1123
    %v1126 = vadd.f32 %v1094, %v1124
    %v1127 = vmul.f32 %v1125, %v1125
    %v1128 = vmul.f32 %v1126, %v1126
    %vm1129 = vcmask 31744
    %v1130 = vsel %vm1129, %v1125, 0.0
    %1131 = vadd.xlane.f32.xlu0 %v1130
    %v1132 = vpop.xlane.xlu0 %1131
    %v1133 = vsel %vm1129, %v1126, 0.0
    %1134 = vadd.xlane.f32.xlu0 %v1133
    %v1135 = vpop.xlane.xlu0 %1134
    %v1136 = vsel %vm1129, %v1127, 0.0
    %1137 = vadd.xlane.f32.xlu0 %v1136
    %v1138 = vpop.xlane.xlu0 %1137
    %v1139 = vsel %vm1129, %v1128, 0.0
    %1140 = vadd.xlane.f32.xlu0 %v1139
    %v1141 = vpop.xlane.xlu0 %1140
    %v1142 = vmul.f32 %v1132, 0.25
    %v1143 = vmul.f32 %v1135, 0.25
    %v1144 = vmul.f32 %v1138, 0.25
    %v1145 = vmul.f32 %v1141, 0.25
    %v1146 = vmul.f32 %v1142, %v1142
    %v1147 = vmul.f32 %v1143, %v1143
    %v1148 = vsub.f32 %v1144, %v1146
    %v1149 = vsub.f32 %v1145, %v1147
    %v1150 = vmax.f32 %v1148, 0.0
    %v1151 = vmax.f32 %v1149, 0.0
    %v1152 = vsub.f32 %v1125, %v1142
    %v1153 = vsub.f32 %v1126, %v1143
    %v1154 = vadd.f32 %v1150, 1e-05
    %v1155 = vadd.f32 %v1151, 1e-05
    %v1156 = vrsqrt.pop %v1154
    %v1157 = vrsqrt.pop %v1155
    %v1158 = vmul.f32 %v1152, %v1156
    %v1159 = vmul.f32 %v1153, %v1157
    %1160 = vset.pattern.permute.xlu0 4
    %1161 = vperm.xlu0 %1160, %v1061
    %v1162 = vpop.permute.xlu0 %1161
    %1164 = vset.pattern.permute.xlu0 4
    %1165 = vperm.xlu0 %1164, %v1062
    %v1166 = vpop.permute.xlu0 %1165
    %v1168 = vmul.f32 %v1158, %v1162
    %v1169 = vmul.f32 %v1159, %v1166
    %1170 = vset.pattern.permute.xlu0 5
    %1171 = vperm.xlu0 %1170, %v1061
    %v1172 = vpop.permute.xlu0 %1171
    %1174 = vset.pattern.permute.xlu0 5
    %1175 = vperm.xlu0 %1174, %v1062
    %v1176 = vpop.permute.xlu0 %1175
    %v1178 = vadd.f32 %v1168, %v1172
    %v1179 = vadd.f32 %v1169, %v1176
    %vm1180 = vcmp.gt.f32.partialorder %v1178, 0.0
    %vm1181 = vcmp.gt.f32.partialorder %v1179, 0.0
    %v1182 = vmul.f32 %v1178, 0.01
    %v1183 = vmul.f32 %v1179, 0.01
    %v1184 = vsel %vm1180, %v1178, %v1182
    %v1185 = vsel %vm1181, %v1179, %v1183
    %v1186 = vld [vmem:[%s2 + $0x6] sm:$0x1]
    %v1187 = vand.u32 %v1186, 1
    %v1188 = vshra.s32 %v1186, 1
    %v1189 = vmul.u32 %v16, 2
    %v1190 = vadd.s32 %v1189, %v1187
    %v1191 = vlaneseq
    %v1192 = vshrl.u32 %v1191, 7
    %v1193 = vsub.s32 0, %v1192
    %v1194 = vrot.slane %v1190, %v1193
    %vm1195 = vcmp.eq.s32.totalorder %v18, %v1194
    %v1196 = vsel %vm1195, 1, 0
    %v1197 = vcvt.s32.f32 %v1196
    %1199 = vset.pattern.permute.xlu0 0
    %1200 = vperm.xlu0 %1199, %v1184
    %v1201 = vpop.permute.xlu0 %1200
    %1204 = vset.pattern.permute.xlu0 0
    %1205 = vperm.xlu0 %1204, %v1185
    %v1206 = vpop.permute.xlu0 %1205
    %v1208 = vlaneseq
    %v1209 = vshrl.u32 %v1208, 7
    %v1210 = vsub.s32 0, %v1209
    %v1211 = vrot.slane %v1197, %v1210
    %v1212 = vmul.f32 %v1201, %v1211
    %v1213 = vmul.f32 %v1206, %v1211
    %1214 = vset.pattern.permute.xlu0 1
    %1215 = vperm.xlu0 %1214, %v1184
    %v1216 = vpop.permute.xlu0 %1215
    %1218 = vset.pattern.permute.xlu0 1
    %1219 = vperm.xlu0 %1218, %v1185
    %v1220 = vpop.permute.xlu0 %1219
    %v1222 = vlaneseq
    %v1223 = vshrl.u32 %v1222, 7
    %v1224 = vsub.s32 1, %v1223
    %v1225 = vrot.slane %v1197, %v1224
    %v1226 = vmul.f32 %v1216, %v1225
    %v1227 = vmul.f32 %v1220, %v1225
    %v1228 = vadd.f32 %v1212, %v1226
    %v1229 = vadd.f32 %v1213, %v1227
    %1230 = vset.pattern.permute.xlu0 2
    %1231 = vperm.xlu0 %1230, %v1184
    %v1232 = vpop.permute.xlu0 %1231
    %1234 = vset.pattern.permute.xlu0 2
    %1235 = vperm.xlu0 %1234, %v1185
    %v1236 = vpop.permute.xlu0 %1235
    %v1238 = vlaneseq
    %v1239 = vshrl.u32 %v1238, 7
    %v1240 = vsub.s32 2, %v1239
    %v1241 = vrot.slane %v1197, %v1240
    %v1242 = vmul.f32 %v1232, %v1241
    %v1243 = vmul.f32 %v1236, %v1241
    %v1244 = vadd.f32 %v1228, %v1242
    %v1245 = vadd.f32 %v1229, %v1243
    %1246 = vset.pattern.permute.xlu0 3
    %1247 = vperm.xlu0 %1246, %v1184
    %v1248 = vpop.permute.xlu0 %1247
    %1250 = vset.pattern.permute.xlu0 3
    %1251 = vperm.xlu0 %1250, %v1185
    %v1252 = vpop.permute.xlu0 %1251
    %v1254 = vlaneseq
    %v1255 = vshrl.u32 %v1254, 7
    %v1256 = vsub.s32 3, %v1255
    %v1257 = vrot.slane %v1197, %v1256
    %v1258 = vmul.f32 %v1248, %v1257
    %v1259 = vmul.f32 %v1252, %v1257
    %v1260 = vadd.f32 %v1244, %v1258
    %v1261 = vadd.f32 %v1245, %v1259
    %v1262 = vlaneseq
    %v1263 = vshrl.u32 %v1262, 7
    %v1264 = vsub.s32 0, %v1263
    %v1265 = vrot.slane %v1188, %v1264
    %vm1266 = vcmp.eq.s32.totalorder %v18, %v1265
    %v1267 = vsel %vm1266, 1, 0
    %v1268 = vcvt.s32.f32 %v1267
    %v1269 = vmul.f32 %v1260, %v1268
    %vm1270 = vcmask 11264
    %v1271 = vsel %vm1270, %v1269, 0.0
    %v1272 = vrot.slane %v1271, 4
    %v1273 = vadd.f32 %v1271, %v1272
    %v1274 = vrot.slane %v1273, 2
    %v1275 = vadd.f32 %v1273, %v1274
    %v1276 = vrot.slane %v1275, 1
    %v1277 = vadd.f32 %v1275, %v1276
    %v1278 = vmul.f32 %v630, %v1277
    %v1280 = vrot.slane %v1268, 4
    %v1282 = vmul.f32 %v1260, %v1280
    %v1284 = vrot.slane %v1282, 4
    %v1286 = vsel %vm1270, %v1284, 0.0
    %v1287 = vrot.slane %v1286, 4
    %v1288 = vadd.f32 %v1286, %v1287
    %v1289 = vrot.slane %v1288, 2
    %v1290 = vadd.f32 %v1288, %v1289
    %v1291 = vrot.slane %v1290, 1
    %v1292 = vadd.f32 %v1290, %v1291
    %v1293 = vmul.f32 %v648, %v1292
    %v1294 = vadd.f32 %v1278, %v1293
    %v1295 = vmul.f32 %v1261, %v1268
    %v1296 = vsel %vm1270, %v1295, 0.0
    %v1297 = vrot.slane %v1296, 4
    %v1298 = vadd.f32 %v1296, %v1297
    %v1299 = vrot.slane %v1298, 2
    %v1300 = vadd.f32 %v1298, %v1299
    %v1301 = vrot.slane %v1300, 1
    %v1302 = vadd.f32 %v1300, %v1301
    %vm1303 = vcmp.eq.s32.totalorder %v18, 2
    %v1304 = vsel %vm1303, 1, 0
    %v1305 = vcvt.s32.f32 %v1304
    %v1306 = vmul.f32 %v1305, %v1302
    %v1307 = vadd.f32 %v1294, %v1306
    %v1308 = vmul.f32 %v1261, %v1280
    %v1310 = vrot.slane %v1308, 4
    %v1312 = vsel %vm1270, %v1310, 0.0
    %v1313 = vrot.slane %v1312, 4
    %v1314 = vadd.f32 %v1312, %v1313
    %v1315 = vrot.slane %v1314, 2
    %v1316 = vadd.f32 %v1314, %v1315
    %v1317 = vrot.slane %v1316, 1
    %v1318 = vadd.f32 %v1316, %v1317
    %vm1319 = vcmp.eq.s32.totalorder %v18, 3
    %v1320 = vsel %vm1319, 1, 0
    %v1321 = vcvt.s32.f32 %v1320
    %v1322 = vmul.f32 %v1321, %v1318
    %v1323 = vadd.f32 %v1307, %v1322
    %v1324 = vld [vmem:[%s2 + $0x7] sm:$0x1]
    %v1325 = vadd.s32 %v1324, 4
    %v1326 = vand.u32 %v1325, 1
    %v1327 = vshra.s32 %v1325, 1
    %v1328 = vadd.s32 %v1189, %v1326
    %v1329 = vlaneseq
    %v1330 = vshrl.u32 %v1329, 7
    %v1331 = vsub.s32 0, %v1330
    %v1332 = vrot.slane %v1328, %v1331
    %vm1333 = vcmp.eq.s32.totalorder %v18, %v1332
    %v1334 = vsel %vm1333, 1, 0
    %v1335 = vcvt.s32.f32 %v1334
    %v1336 = vlaneseq
    %v1337 = vshrl.u32 %v1336, 7
    %v1338 = vsub.s32 0, %v1337
    %v1339 = vrot.slane %v1335, %v1338
    %v1340 = vmul.f32 %v1201, %v1339
    %v1341 = vmul.f32 %v1206, %v1339
    %v1342 = vlaneseq
    %v1343 = vshrl.u32 %v1342, 7
    %v1344 = vsub.s32 1, %v1343
    %v1345 = vrot.slane %v1335, %v1344
    %v1346 = vmul.f32 %v1216, %v1345
    %v1347 = vmul.f32 %v1220, %v1345
    %v1348 = vadd.f32 %v1340, %v1346
    %v1349 = vadd.f32 %v1341, %v1347
    %v1350 = vlaneseq
    %v1351 = vshrl.u32 %v1350, 7
    %v1352 = vsub.s32 2, %v1351
    %v1353 = vrot.slane %v1335, %v1352
    %v1354 = vmul.f32 %v1232, %v1353
    %v1355 = vmul.f32 %v1236, %v1353
    %v1356 = vadd.f32 %v1348, %v1354
    %v1357 = vadd.f32 %v1349, %v1355
    %v1358 = vlaneseq
    %v1359 = vshrl.u32 %v1358, 7
    %v1360 = vsub.s32 3, %v1359
    %v1361 = vrot.slane %v1335, %v1360
    %v1362 = vmul.f32 %v1248, %v1361
    %v1363 = vmul.f32 %v1252, %v1361
    %v1364 = vadd.f32 %v1356, %v1362
    %v1365 = vadd.f32 %v1357, %v1363
    %v1366 = vlaneseq
    %v1367 = vshrl.u32 %v1366, 7
    %v1368 = vsub.s32 0, %v1367
    %v1369 = vrot.slane %v1327, %v1368
    %vm1370 = vcmp.eq.s32.totalorder %v18, %v1369
    %v1371 = vsel %vm1370, 1, 0
    %v1372 = vcvt.s32.f32 %v1371
    %v1373 = vmul.f32 %v1364, %v1372
    %v1374 = vsel %vm1270, %v1373, 0.0
    %v1375 = vrot.slane %v1374, 4
    %v1376 = vadd.f32 %v1374, %v1375
    %v1377 = vrot.slane %v1376, 2
    %v1378 = vadd.f32 %v1376, %v1377
    %v1379 = vrot.slane %v1378, 1
    %v1380 = vadd.f32 %v1378, %v1379
    %v1381 = vmul.f32 %v630, %v1380
    %v1383 = vrot.slane %v1372, 4
    %v1385 = vmul.f32 %v1364, %v1383
    %v1387 = vrot.slane %v1385, 4
    %v1389 = vsel %vm1270, %v1387, 0.0
    %v1390 = vrot.slane %v1389, 4
    %v1391 = vadd.f32 %v1389, %v1390
    %v1392 = vrot.slane %v1391, 2
    %v1393 = vadd.f32 %v1391, %v1392
    %v1394 = vrot.slane %v1393, 1
    %v1395 = vadd.f32 %v1393, %v1394
    %v1396 = vmul.f32 %v648, %v1395
    %v1397 = vadd.f32 %v1381, %v1396
    %v1398 = vmul.f32 %v1365, %v1372
    %v1399 = vsel %vm1270, %v1398, 0.0
    %v1400 = vrot.slane %v1399, 4
    %v1401 = vadd.f32 %v1399, %v1400
    %v1402 = vrot.slane %v1401, 2
    %v1403 = vadd.f32 %v1401, %v1402
    %v1404 = vrot.slane %v1403, 1
    %v1405 = vadd.f32 %v1403, %v1404
    %v1406 = vmul.f32 %v1305, %v1405
    %v1407 = vadd.f32 %v1397, %v1406
    %v1408 = vmul.f32 %v1365, %v1383
    %v1410 = vrot.slane %v1408, 4
    %v1412 = vsel %vm1270, %v1410, 0.0
    %v1413 = vrot.slane %v1412, 4
    %v1414 = vadd.f32 %v1412, %v1413
    %v1415 = vrot.slane %v1414, 2
    %v1416 = vadd.f32 %v1414, %v1415
    %v1417 = vrot.slane %v1416, 1
    %v1418 = vadd.f32 %v1416, %v1417
    %v1419 = vmul.f32 %v1321, %v1418
    %v1420 = vadd.f32 %v1407, %v1419
    %v1421 = vld [vmem:[%s1 + $0x24] sm:$0xff]
    %v1422 = vld [vmem:[%s1 + $0x2c] sm:$0x1]
    %v1423 = vlaneseq
    %v1424 = vshrl.u32 %v1423, 7
    %v1425 = vsub.s32 0, %v1424
    %v1426 = vrot.slane %v1422, %v1425
    %v1427 = vadd.f32 %v1426, 0.0
    %1429 = vset.pattern.permute.xlu0 0
    %1430 = vperm.xlu0 %1429, %v1323
    %v1431 = vpop.permute.xlu0 %1430
    %v1433 = vmul.f32 %v1431, %v1421
    %v1435 = vrot.slane %v1433, 1
    %v1437 = vadd.f32 %v1433, %v1435
    %v1438 = vrot.slane %v1433, 2
    %v1440 = vadd.f32 %v1437, %v1438
    %v1441 = vrot.slane %v1433, 3
    %v1443 = vadd.f32 %v1440, %v1441
    %1445 = vset.pattern.permute.xlu0 0
    %1446 = vperm.xlu0 %1445, %v1420
    %v1447 = vpop.permute.xlu0 %1446
    %v1450 = vrot.slane %v1421, 4
    %v1452 = vmul.f32 %v1447, %v1450
    %v1453 = vadd.f32 %v1443, %v1452
    %v1455 = vrot.slane %v1452, 1
    %v1457 = vadd.f32 %v1453, %v1455
    %v1458 = vrot.slane %v1452, 2
    %v1460 = vadd.f32 %v1457, %v1458
    %v1461 = vrot.slane %v1452, 3
    %v1463 = vadd.f32 %v1460, %v1461
    %v1464 = vlaneseq
    %v1465 = vshrl.u32 %v1464, 7
    %v1466 = vsub.s32 0, %v1465
    %v1467 = vrot.slane %v1463, %v1466
    %v1468 = vmul.f32 %v630, %v1467
    %v1469 = vadd.f32 %v1427, %v1468
    %1470 = vset.pattern.permute.xlu0 1
    %1471 = vperm.xlu0 %1470, %v1323
    %v1472 = vpop.permute.xlu0 %1471
    %v1474 = vmul.f32 %v1472, %v1421
    %v1476 = vrot.slane %v1474, 1
    %v1478 = vadd.f32 %v1474, %v1476
    %v1479 = vrot.slane %v1474, 2
    %v1481 = vadd.f32 %v1478, %v1479
    %v1482 = vrot.slane %v1474, 3
    %v1484 = vadd.f32 %v1481, %v1482
    %1485 = vset.pattern.permute.xlu0 1
    %1486 = vperm.xlu0 %1485, %v1420
    %v1487 = vpop.permute.xlu0 %1486
    %v1489 = vmul.f32 %v1487, %v1450
    %v1490 = vadd.f32 %v1484, %v1489
    %v1492 = vrot.slane %v1489, 1
    %v1494 = vadd.f32 %v1490, %v1492
    %v1495 = vrot.slane %v1489, 2
    %v1497 = vadd.f32 %v1494, %v1495
    %v1498 = vrot.slane %v1489, 3
    %v1500 = vadd.f32 %v1497, %v1498
    %v1501 = vlaneseq
    %v1502 = vshrl.u32 %v1501, 7
    %v1503 = vsub.s32 0, %v1502
    %v1504 = vrot.slane %v1500, %v1503
    %v1505 = vmul.f32 %v648, %v1504
    %v1506 = vadd.f32 %v1469, %v1505
    %vm1507 = vcmask 123904
    %1508 = vst.msk [vmem:[#allocation2] sm:$0x3] %vm1507, %v1506
    // Predicated region
    $region14: #{kdnet_forward.1} parent=1 // pred_check
      _
    $region15: #{kdnet_forward.1} parent=1 // pred_check_branch
      %1510 = sbr.rel (0) target = $region17
    $region16: #{kdnet_forward.1} parent=1 // pred_region
      %s1512 = ssub.s32 32, 32
      %1513 = vsyncadd [#allocation3], %s1512
      %s1515 = sshll.u32 [#allocation2], 4
      %s1516 = int_to_ptr.vmem [resolvable:$true] %s1515
      %1518 = dma.vmem_to_hbm [thread:$0]  %s1516, 32, %s3, [#allocation3]
    $region17: #{kdnet_forward.1} parent=1 // pred_fallthru
      _
    // Predicated region
    $region18: #{kdnet_forward.1} parent=1 // pred_check
      _
    $region19: #{kdnet_forward.1} parent=1 // pred_check_branch
      %1520 = sbr.rel (0) target = $region21
    $region20: #{kdnet_forward.1} parent=1 // pred_region
      %1521 = dma.done [#allocation3], 32
    $region21: #{kdnet_forward.1} parent=1 // pred_fallthru
      _
    %1522 = vsyncpa [#allocation3], 1

</llo_original>
